<compile_context>
chip_gen: v6e
topology: v6e:2x2x1
jax: 0.10.0
libtpu: 0.0.40
codegen_flags: <defaults>
</compile_context>

<pallas_src>
import jax
import jax.numpy as jnp
import numpy as np
from jax.experimental import pallas as pl
from jax.experimental.pallas import tpu as pltpu


def _round_up(x, m):
    return (x + m - 1) // m * m


def _build_kernel(TS, group):
    """group=8 -> dense (8, D) sublane-packed stores; group=1 -> per-row stores."""

    def kernel(ids_ref, wte_ref, learned_ref, out_ref):
        base = pl.program_id(0) * TS
        for g in range(TS // group):
            rows = []
            for j in range(group):
                idx = ids_ref[base + g * group + j]
                is_prompt = idx < 0
                # Per-row gather from the VMEM-resident tables. Only the source
                # row index is dynamic; the destination row offset is static.
                w_row = wte_ref[pl.ds(jnp.maximum(idx, 0), 1), :]
                l_row = learned_ref[pl.ds(jnp.where(is_prompt, -idx - 1, 0), 1), :]
                rows.append(jnp.where(is_prompt, l_row, w_row))
            if group == 1:
                out_ref[pl.ds(g, 1), :] = rows[0]
            else:
                # Assemble 8 gathered rows in vregs and issue one dense store.
                out_ref[pl.ds(g * group, group), :] = jnp.concatenate(rows, axis=0)

    return kernel


def soft_embedding_forward(tokens, wte_weight, learned_embedding, *, n_tokens, tile_rows=128):
    """tokens: [B, S] int; wte_weight: [V, D]; learned_embedding: [n_tokens, D]."""
    B, S = tokens.shape
    V, D = wte_weight.shape
    n_tok, D2 = learned_embedding.shape
    assert n_tok == n_tokens and D2 == D
    assert wte_weight.dtype == learned_embedding.dtype, "table dtypes must match"
    dtype = wte_weight.dtype
    itemsize = jnp.dtype(dtype).itemsize

    R = B * S
    TS = _round_up(min(int(tile_rows), _round_up(R, 8)), 8)
    R_pad = _round_up(R, TS)
    n_tiles = R_pad // TS

    # Remapped per-row source ids (computed once here, scalar-prefetched to SMEM):
    #   id >= 0  -> gather wte[id]         (token ids clamped to [0, V) for safety)
    #   id <  0  -> copy learned[-id - 1]  (soft-prompt position s = -id - 1)
    s_idx = jnp.broadcast_to(jnp.arange(S, dtype=jnp.int32)[None, :], (B, S))
    wte_ids = jnp.clip(tokens.astype(jnp.int32), 0, V - 1)
    flat_ids = jnp.where(s_idx < n_tokens, -(s_idx + 1), wte_ids).reshape(-1)
    if R_pad != R:
        # Pad rows gather wte[0]; their output rows are sliced off below.
        flat_ids = jnp.pad(flat_ids, (0, R_pad - R))

    resident_bytes = (V * D + n_tokens * D) * itemsize
    tile_bytes = TS * D * itemsize
    needed = 2 * resident_bytes + 2 * tile_bytes + (1 << 20)
    # Raise v5e's 16 MiB default but stay within every chip's default scoped cap.
    vmem_limit = int(min(max(needed, 16 * 1024 * 1024), 32 * 1024 * 1024))

    cost = pl.CostEstimate(
        flops=0,
        transcendentals=0,
        bytes_accessed=int((R_pad * D + V * D + n_tokens * D) * itemsize + R_pad * 4),
    )

    def run(group):
        grid_spec = pltpu.PrefetchScalarGridSpec(
            num_scalar_prefetch=1,
            grid=(n_tiles,),
            in_specs=[
                # Whole wte table resident in VMEM (constant block index -> DMA'd once).
                # TODO(synk): for vocab tables too large for VMEM, switch this spec to
                # memory_space=pl.ANY and gather rows in-kernel with
                # pltpu.make_async_copy at pipeline depth > 2 instead of a resident block.
                pl.BlockSpec((V, D), lambda i, ids: (0, 0)),
                # Tiny learned-prompt table, also fully resident.
                pl.BlockSpec((n_tokens, D), lambda i, ids: (0, 0)),
            ],
            out_specs=pl.BlockSpec((TS, D), lambda i, ids: (i, 0)),
        )
        return pl.pallas_call(
            _build_kernel(TS, group),
            out_shape=jax.ShapeDtypeStruct((R_pad, D), dtype),
            grid_spec=grid_spec,
            compiler_params=pltpu.CompilerParams(
                dimension_semantics=("parallel",),
                vmem_limit_bytes=vmem_limit,
            ),
            cost_estimate=cost,
        )(flat_ids, wte_weight, learned_embedding)

    try:
        out_flat = run(8)   # dense 8-row (sublane-packed) stores
    except Exception:
        out_flat = run(1)   # proven per-row-store fallback

    if R_pad != R:
        out_flat = out_flat[:R]
    return out_flat.reshape(B, S, D)


if __name__ == "__main__":
    key = jax.random.PRNGKey(0)
    k_wte, k_tok = jax.random.split(key)

    B, S = 2, 16          # batch, total sequence length (soft prompt + text)
    V, D = 32, 128        # vocab size, embedding dim
    N_TOKENS = 4          # number of soft-prompt tokens

    # Deterministic parameter init (nn.Embedding weight analogue).
    wte_weight = jax.random.normal(k_wte, (V, D), dtype=jnp.float32)
    # initialize_from_vocab=True -> learned_embedding = wte.weight[:n_tokens]
    learned_embedding = wte_weight[:N_TOKENS]
    tokens = jax.random.randint(k_tok, (B, S), 0, V, dtype=jnp.int32)

    out = soft_embedding_forward(tokens, wte_weight, learned_embedding, n_tokens=N_TOKENS)
    out = jax.block_until_ready(out)

    # Pure-JAX reference of the PyTorch forward.
    input_emb = jnp.take(wte_weight, tokens[:, N_TOKENS:], axis=0)          # [B, S-n, D]
    learned_rep = jnp.broadcast_to(learned_embedding, (B, N_TOKENS, D))     # [B, n, D]
    ref = jnp.concatenate([learned_rep, input_emb], axis=1)                 # [B, S, D]
    np.testing.assert_allclose(np.asarray(out), np.asarray(ref), rtol=1e-6, atol=1e-6)

    print("KERNEL_OK")
</pallas_src>

<mosaic_0001>
module attributes {stable_mosaic.version = 11 : i64} {
  func.func @kernel(%arg0: i32, %arg1: memref<32xi32, #tpu.memory_space<smem>>, %arg2: memref<32x128xf32, #tpu.memory_space<vmem>>, %arg3: memref<4x128xf32, #tpu.memory_space<vmem>>, %arg4: memref<32x128xf32, #tpu.memory_space<vmem>>) attributes {dimension_semantics = [#tpu.dimension_semantics<parallel>], iteration_bounds = array<i64: 1>, scalar_prefetch = 1 : i64, scratch_operands = 0 : i64, tpu.core_type = #tpu.core_type<tc>, window_params = [{pipeline_mode = #tpu.pipeline_mode<synchronous>, transform_indices = @transform_0, window_bounds = array<i64: 32, 128>}, {pipeline_mode = #tpu.pipeline_mode<synchronous>, transform_indices = @transform_1, window_bounds = array<i64: 4, 128>}, {transform_indices = @transform_2, window_bounds = array<i64: 32, 128>}]} {
    %c32_i32 = arith.constant 32 : i32
    %0 = arith.muli %arg0, %c32_i32 : i32
    %c0_i32 = arith.constant 0 : i32
    %1 = arith.addi %0, %c0_i32 : i32
    %c0_i32_0 = arith.constant 0 : i32
    %2 = arith.addi %1, %c0_i32_0 : i32
    %3 = arith.index_cast %2 : i32 to index
    %4 = memref.load %arg1[%3] : memref<32xi32, #tpu.memory_space<smem>>
    %c0_i32_1 = arith.constant 0 : i32
    %5 = arith.cmpi slt, %4, %c0_i32_1 : i32
    %c0_i32_2 = arith.constant 0 : i32
    %6 = arith.maxsi %4, %c0_i32_2 : i32
    %7 = arith.index_cast %6 : i32 to index
    %c0 = arith.constant 0 : index
    %8 = vector.load %arg2[%7, %c0] : memref<32x128xf32, #tpu.memory_space<vmem>>, vector<1x128xf32>
    %c0_i32_3 = arith.constant 0 : i32
    %9 = arith.subi %c0_i32_3, %4 : i32
    %c1_i32 = arith.constant 1 : i32
    %10 = arith.subi %9, %c1_i32 : i32
    %c0_i32_4 = arith.constant 0 : i32
    %11 = arith.select %5, %10, %c0_i32_4 : i32
    %12 = arith.index_cast %11 : i32 to index
    %c0_5 = arith.constant 0 : index
    %13 = vector.load %arg3[%12, %c0_5] : memref<4x128xf32, #tpu.memory_space<vmem>>, vector<1x128xf32>
    %14 = arith.select %5, %13, %8 : vector<1x128xf32>
    %c0_i32_6 = arith.constant 0 : i32
    %15 = arith.addi %0, %c0_i32_6 : i32
    %c1_i32_7 = arith.constant 1 : i32
    %16 = arith.addi %15, %c1_i32_7 : i32
    %17 = arith.index_cast %16 : i32 to index
    %18 = memref.load %arg1[%17] : memref<32xi32, #tpu.memory_space<smem>>
    %c0_i32_8 = arith.constant 0 : i32
    %19 = arith.cmpi slt, %18, %c0_i32_8 : i32
    %c0_i32_9 = arith.constant 0 : i32
    %20 = arith.maxsi %18, %c0_i32_9 : i32
    %21 = arith.index_cast %20 : i32 to index
    %c0_10 = arith.constant 0 : index
    %22 = vector.load %arg2[%21, %c0_10] : memref<32x128xf32, #tpu.memory_space<vmem>>, vector<1x128xf32>
    %c0_i32_11 = arith.constant 0 : i32
    %23 = arith.subi %c0_i32_11, %18 : i32
    %c1_i32_12 = arith.constant 1 : i32
    %24 = arith.subi %23, %c1_i32_12 : i32
    %c0_i32_13 = arith.constant 0 : i32
    %25 = arith.select %19, %24, %c0_i32_13 : i32
    %26 = arith.index_cast %25 : i32 to index
    %c0_14 = arith.constant 0 : index
    %27 = vector.load %arg3[%26, %c0_14] : memref<4x128xf32, #tpu.memory_space<vmem>>, vector<1x128xf32>
    %28 = arith.select %19, %27, %22 : vector<1x128xf32>
    %c0_i32_15 = arith.constant 0 : i32
    %29 = arith.addi %0, %c0_i32_15 : i32
    %c2_i32 = arith.constant 2 : i32
    %30 = arith.addi %29, %c2_i32 : i32
    %31 = arith.index_cast %30 : i32 to index
    %32 = memref.load %arg1[%31] : memref<32xi32, #tpu.memory_space<smem>>
    %c0_i32_16 = arith.constant 0 : i32
    %33 = arith.cmpi slt, %32, %c0_i32_16 : i32
    %c0_i32_17 = arith.constant 0 : i32
    %34 = arith.maxsi %32, %c0_i32_17 : i32
    %35 = arith.index_cast %34 : i32 to index
    %c0_18 = arith.constant 0 : index
    %36 = vector.load %arg2[%35, %c0_18] : memref<32x128xf32, #tpu.memory_space<vmem>>, vector<1x128xf32>
    %c0_i32_19 = arith.constant 0 : i32
    %37 = arith.subi %c0_i32_19, %32 : i32
    %c1_i32_20 = arith.constant 1 : i32
    %38 = arith.subi %37, %c1_i32_20 : i32
    %c0_i32_21 = arith.constant 0 : i32
    %39 = arith.select %33, %38, %c0_i32_21 : i32
    %40 = arith.index_cast %39 : i32 to index
    %c0_22 = arith.constant 0 : index
    %41 = vector.load %arg3[%40, %c0_22] : memref<4x128xf32, #tpu.memory_space<vmem>>, vector<1x128xf32>
    %42 = arith.select %33, %41, %36 : vector<1x128xf32>
    %c0_i32_23 = arith.constant 0 : i32
    %43 = arith.addi %0, %c0_i32_23 : i32
    %c3_i32 = arith.constant 3 : i32
    %44 = arith.addi %43, %c3_i32 : i32
    %45 = arith.index_cast %44 : i32 to index
    %46 = memref.load %arg1[%45] : memref<32xi32, #tpu.memory_space<smem>>
    %c0_i32_24 = arith.constant 0 : i32
    %47 = arith.cmpi slt, %46, %c0_i32_24 : i32
    %c0_i32_25 = arith.constant 0 : i32
    %48 = arith.maxsi %46, %c0_i32_25 : i32
    %49 = arith.index_cast %48 : i32 to index
    %c0_26 = arith.constant 0 : index
    %50 = vector.load %arg2[%49, %c0_26] : memref<32x128xf32, #tpu.memory_space<vmem>>, vector<1x128xf32>
    %c0_i32_27 = arith.constant 0 : i32
    %51 = arith.subi %c0_i32_27, %46 : i32
    %c1_i32_28 = arith.constant 1 : i32
    %52 = arith.subi %51, %c1_i32_28 : i32
    %c0_i32_29 = arith.constant 0 : i32
    %53 = arith.select %47, %52, %c0_i32_29 : i32
    %54 = arith.index_cast %53 : i32 to index
    %c0_30 = arith.constant 0 : index
    %55 = vector.load %arg3[%54, %c0_30] : memref<4x128xf32, #tpu.memory_space<vmem>>, vector<1x128xf32>
    %56 = arith.select %47, %55, %50 : vector<1x128xf32>
    %c0_i32_31 = arith.constant 0 : i32
    %57 = arith.addi %0, %c0_i32_31 : i32
    %c4_i32 = arith.constant 4 : i32
    %58 = arith.addi %57, %c4_i32 : i32
    %59 = arith.index_cast %58 : i32 to index
    %60 = memref.load %arg1[%59] : memref<32xi32, #tpu.memory_space<smem>>
    %c0_i32_32 = arith.constant 0 : i32
    %61 = arith.cmpi slt, %60, %c0_i32_32 : i32
    %c0_i32_33 = arith.constant 0 : i32
    %62 = arith.maxsi %60, %c0_i32_33 : i32
    %63 = arith.index_cast %62 : i32 to index
    %c0_34 = arith.constant 0 : index
    %64 = vector.load %arg2[%63, %c0_34] : memref<32x128xf32, #tpu.memory_space<vmem>>, vector<1x128xf32>
    %c0_i32_35 = arith.constant 0 : i32
    %65 = arith.subi %c0_i32_35, %60 : i32
    %c1_i32_36 = arith.constant 1 : i32
    %66 = arith.subi %65, %c1_i32_36 : i32
    %c0_i32_37 = arith.constant 0 : i32
    %67 = arith.select %61, %66, %c0_i32_37 : i32
    %68 = arith.index_cast %67 : i32 to index
    %c0_38 = arith.constant 0 : index
    %69 = vector.load %arg3[%68, %c0_38] : memref<4x128xf32, #tpu.memory_space<vmem>>, vector<1x128xf32>
    %70 = arith.select %61, %69, %64 : vector<1x128xf32>
    %c0_i32_39 = arith.constant 0 : i32
    %71 = arith.addi %0, %c0_i32_39 : i32
    %c5_i32 = arith.constant 5 : i32
    %72 = arith.addi %71, %c5_i32 : i32
    %73 = arith.index_cast %72 : i32 to index
    %74 = memref.load %arg1[%73] : memref<32xi32, #tpu.memory_space<smem>>
    %c0_i32_40 = arith.constant 0 : i32
    %75 = arith.cmpi slt, %74, %c0_i32_40 : i32
    %c0_i32_41 = arith.constant 0 : i32
    %76 = arith.maxsi %74, %c0_i32_41 : i32
    %77 = arith.index_cast %76 : i32 to index
    %c0_42 = arith.constant 0 : index
    %78 = vector.load %arg2[%77, %c0_42] : memref<32x128xf32, #tpu.memory_space<vmem>>, vector<1x128xf32>
    %c0_i32_43 = arith.constant 0 : i32
    %79 = arith.subi %c0_i32_43, %74 : i32
    %c1_i32_44 = arith.constant 1 : i32
    %80 = arith.subi %79, %c1_i32_44 : i32
    %c0_i32_45 = arith.constant 0 : i32
    %81 = arith.select %75, %80, %c0_i32_45 : i32
    %82 = arith.index_cast %81 : i32 to index
    %c0_46 = arith.constant 0 : index
    %83 = vector.load %arg3[%82, %c0_46] : memref<4x128xf32, #tpu.memory_space<vmem>>, vector<1x128xf32>
    %84 = arith.select %75, %83, %78 : vector<1x128xf32>
    %c0_i32_47 = arith.constant 0 : i32
    %85 = arith.addi %0, %c0_i32_47 : i32
    %c6_i32 = arith.constant 6 : i32
    %86 = arith.addi %85, %c6_i32 : i32
    %87 = arith.index_cast %86 : i32 to index
    %88 = memref.load %arg1[%87] : memref<32xi32, #tpu.memory_space<smem>>
    %c0_i32_48 = arith.constant 0 : i32
    %89 = arith.cmpi slt, %88, %c0_i32_48 : i32
    %c0_i32_49 = arith.constant 0 : i32
    %90 = arith.maxsi %88, %c0_i32_49 : i32
    %91 = arith.index_cast %90 : i32 to index
    %c0_50 = arith.constant 0 : index
    %92 = vector.load %arg2[%91, %c0_50] : memref<32x128xf32, #tpu.memory_space<vmem>>, vector<1x128xf32>
    %c0_i32_51 = arith.constant 0 : i32
    %93 = arith.subi %c0_i32_51, %88 : i32
    %c1_i32_52 = arith.constant 1 : i32
    %94 = arith.subi %93, %c1_i32_52 : i32
    %c0_i32_53 = arith.constant 0 : i32
    %95 = arith.select %89, %94, %c0_i32_53 : i32
    %96 = arith.index_cast %95 : i32 to index
    %c0_54 = arith.constant 0 : index
    %97 = vector.load %arg3[%96, %c0_54] : memref<4x128xf32, #tpu.memory_space<vmem>>, vector<1x128xf32>
    %98 = arith.select %89, %97, %92 : vector<1x128xf32>
    %c0_i32_55 = arith.constant 0 : i32
    %99 = arith.addi %0, %c0_i32_55 : i32
    %c7_i32 = arith.constant 7 : i32
    %100 = arith.addi %99, %c7_i32 : i32
    %101 = arith.index_cast %100 : i32 to index
    %102 = memref.load %arg1[%101] : memref<32xi32, #tpu.memory_space<smem>>
    %c0_i32_56 = arith.constant 0 : i32
    %103 = arith.cmpi slt, %102, %c0_i32_56 : i32
    %c0_i32_57 = arith.constant 0 : i32
    %104 = arith.maxsi %102, %c0_i32_57 : i32
    %105 = arith.index_cast %104 : i32 to index
    %c0_58 = arith.constant 0 : index
    %106 = vector.load %arg2[%105, %c0_58] : memref<32x128xf32, #tpu.memory_space<vmem>>, vector<1x128xf32>
    %c0_i32_59 = arith.constant 0 : i32
    %107 = arith.subi %c0_i32_59, %102 : i32
    %c1_i32_60 = arith.constant 1 : i32
    %108 = arith.subi %107, %c1_i32_60 : i32
    %c0_i32_61 = arith.constant 0 : i32
    %109 = arith.select %103, %108, %c0_i32_61 : i32
    %110 = arith.index_cast %109 : i32 to index
    %c0_62 = arith.constant 0 : index
    %111 = vector.load %arg3[%110, %c0_62] : memref<4x128xf32, #tpu.memory_space<vmem>>, vector<1x128xf32>
    %112 = arith.select %103, %111, %106 : vector<1x128xf32>
    %113 = tpu.concatenate %14, %28, %42, %56, %70, %84, %98, %112 in 0 : vector<1x128xf32>, vector<1x128xf32>, vector<1x128xf32>, vector<1x128xf32>, vector<1x128xf32>, vector<1x128xf32>, vector<1x128xf32>, vector<1x128xf32> -> vector<8x128xf32>
    %c0_63 = arith.constant 0 : index
    %c0_64 = arith.constant 0 : index
    %114 = vector.load %arg4[%c0_63, %c0_64] : memref<32x128xf32, #tpu.memory_space<vmem>>, vector<8x128xf32>
    tpu.vector_store %arg4[%c0_63, %c0_64], %113 {strides = array<i32>} : memref<32x128xf32, #tpu.memory_space<vmem>>, vector<8x128xf32>,
    %c8_i32 = arith.constant 8 : i32
    %115 = arith.addi %0, %c8_i32 : i32
    %c0_i32_65 = arith.constant 0 : i32
    %116 = arith.addi %115, %c0_i32_65 : i32
    %117 = arith.index_cast %116 : i32 to index
    %118 = memref.load %arg1[%117] : memref<32xi32, #tpu.memory_space<smem>>
    %c0_i32_66 = arith.constant 0 : i32
    %119 = arith.cmpi slt, %118, %c0_i32_66 : i32
    %c0_i32_67 = arith.constant 0 : i32
    %120 = arith.maxsi %118, %c0_i32_67 : i32
    %121 = arith.index_cast %120 : i32 to index
    %c0_68 = arith.constant 0 : index
    %122 = vector.load %arg2[%121, %c0_68] : memref<32x128xf32, #tpu.memory_space<vmem>>, vector<1x128xf32>
    %c0_i32_69 = arith.constant 0 : i32
    %123 = arith.subi %c0_i32_69, %118 : i32
    %c1_i32_70 = arith.constant 1 : i32
    %124 = arith.subi %123, %c1_i32_70 : i32
    %c0_i32_71 = arith.constant 0 : i32
    %125 = arith.select %119, %124, %c0_i32_71 : i32
    %126 = arith.index_cast %125 : i32 to index
    %c0_72 = arith.constant 0 : index
    %127 = vector.load %arg3[%126, %c0_72] : memref<4x128xf32, #tpu.memory_space<vmem>>, vector<1x128xf32>
    %128 = arith.select %119, %127, %122 : vector<1x128xf32>
    %c8_i32_73 = arith.constant 8 : i32
    %129 = arith.addi %0, %c8_i32_73 : i32
    %c1_i32_74 = arith.constant 1 : i32
    %130 = arith.addi %129, %c1_i32_74 : i32
    %131 = arith.index_cast %130 : i32 to index
    %132 = memref.load %arg1[%131] : memref<32xi32, #tpu.memory_space<smem>>
    %c0_i32_75 = arith.constant 0 : i32
    %133 = arith.cmpi slt, %132, %c0_i32_75 : i32
    %c0_i32_76 = arith.constant 0 : i32
    %134 = arith.maxsi %132, %c0_i32_76 : i32
    %135 = arith.index_cast %134 : i32 to index
    %c0_77 = arith.constant 0 : index
    %136 = vector.load %arg2[%135, %c0_77] : memref<32x128xf32, #tpu.memory_space<vmem>>, vector<1x128xf32>
    %c0_i32_78 = arith.constant 0 : i32
    %137 = arith.subi %c0_i32_78, %132 : i32
    %c1_i32_79 = arith.constant 1 : i32
    %138 = arith.subi %137, %c1_i32_79 : i32
    %c0_i32_80 = arith.constant 0 : i32
    %139 = arith.select %133, %138, %c0_i32_80 : i32
    %140 = arith.index_cast %139 : i32 to index
    %c0_81 = arith.constant 0 : index
    %141 = vector.load %arg3[%140, %c0_81] : memref<4x128xf32, #tpu.memory_space<vmem>>, vector<1x128xf32>
    %142 = arith.select %133, %141, %136 : vector<1x128xf32>
    %c8_i32_82 = arith.constant 8 : i32
    %143 = arith.addi %0, %c8_i32_82 : i32
    %c2_i32_83 = arith.constant 2 : i32
    %144 = arith.addi %143, %c2_i32_83 : i32
    %145 = arith.index_cast %144 : i32 to index
    %146 = memref.load %arg1[%145] : memref<32xi32, #tpu.memory_space<smem>>
    %c0_i32_84 = arith.constant 0 : i32
    %147 = arith.cmpi slt, %146, %c0_i32_84 : i32
    %c0_i32_85 = arith.constant 0 : i32
    %148 = arith.maxsi %146, %c0_i32_85 : i32
    %149 = arith.index_cast %148 : i32 to index
    %c0_86 = arith.constant 0 : index
    %150 = vector.load %arg2[%149, %c0_86] : memref<32x128xf32, #tpu.memory_space<vmem>>, vector<1x128xf32>
    %c0_i32_87 = arith.constant 0 : i32
    %151 = arith.subi %c0_i32_87, %146 : i32
    %c1_i32_88 = arith.constant 1 : i32
    %152 = arith.subi %151, %c1_i32_88 : i32
    %c0_i32_89 = arith.constant 0 : i32
    %153 = arith.select %147, %152, %c0_i32_89 : i32
    %154 = arith.index_cast %153 : i32 to index
    %c0_90 = arith.constant 0 : index
    %155 = vector.load %arg3[%154, %c0_90] : memref<4x128xf32, #tpu.memory_space<vmem>>, vector<1x128xf32>
    %156 = arith.select %147, %155, %150 : vector<1x128xf32>
    %c8_i32_91 = arith.constant 8 : i32
    %157 = arith.addi %0, %c8_i32_91 : i32
    %c3_i32_92 = arith.constant 3 : i32
    %158 = arith.addi %157, %c3_i32_92 : i32
    %159 = arith.index_cast %158 : i32 to index
    %160 = memref.load %arg1[%159] : memref<32xi32, #tpu.memory_space<smem>>
    %c0_i32_93 = arith.constant 0 : i32
    %161 = arith.cmpi slt, %160, %c0_i32_93 : i32
    %c0_i32_94 = arith.constant 0 : i32
    %162 = arith.maxsi %160, %c0_i32_94 : i32
    %163 = arith.index_cast %162 : i32 to index
    %c0_95 = arith.constant 0 : index
    %164 = vector.load %arg2[%163, %c0_95] : memref<32x128xf32, #tpu.memory_space<vmem>>, vector<1x128xf32>
    %c0_i32_96 = arith.constant 0 : i32
    %165 = arith.subi %c0_i32_96, %160 : i32
    %c1_i32_97 = arith.constant 1 : i32
    %166 = arith.subi %165, %c1_i32_97 : i32
    %c0_i32_98 = arith.constant 0 : i32
    %167 = arith.select %161, %166, %c0_i32_98 : i32
    %168 = arith.index_cast %167 : i32 to index
    %c0_99 = arith.constant 0 : index
    %169 = vector.load %arg3[%168, %c0_99] : memref<4x128xf32, #tpu.memory_space<vmem>>, vector<1x128xf32>
    %170 = arith.select %161, %169, %164 : vector<1x128xf32>
    %c8_i32_100 = arith.constant 8 : i32
    %171 = arith.addi %0, %c8_i32_100 : i32
    %c4_i32_101 = arith.constant 4 : i32
    %172 = arith.addi %171, %c4_i32_101 : i32
    %173 = arith.index_cast %172 : i32 to index
    %174 = memref.load %arg1[%173] : memref<32xi32, #tpu.memory_space<smem>>
    %c0_i32_102 = arith.constant 0 : i32
    %175 = arith.cmpi slt, %174, %c0_i32_102 : i32
    %c0_i32_103 = arith.constant 0 : i32
    %176 = arith.maxsi %174, %c0_i32_103 : i32
    %177 = arith.index_cast %176 : i32 to index
    %c0_104 = arith.constant 0 : index
    %178 = vector.load %arg2[%177, %c0_104] : memref<32x128xf32, #tpu.memory_space<vmem>>, vector<1x128xf32>
    %c0_i32_105 = arith.constant 0 : i32
    %179 = arith.subi %c0_i32_105, %174 : i32
    %c1_i32_106 = arith.constant 1 : i32
    %180 = arith.subi %179, %c1_i32_106 : i32
    %c0_i32_107 = arith.constant 0 : i32
    %181 = arith.select %175, %180, %c0_i32_107 : i32
    %182 = arith.index_cast %181 : i32 to index
    %c0_108 = arith.constant 0 : index
    %183 = vector.load %arg3[%182, %c0_108] : memref<4x128xf32, #tpu.memory_space<vmem>>, vector<1x128xf32>
    %184 = arith.select %175, %183, %178 : vector<1x128xf32>
    %c8_i32_109 = arith.constant 8 : i32
    %185 = arith.addi %0, %c8_i32_109 : i32
    %c5_i32_110 = arith.constant 5 : i32
    %186 = arith.addi %185, %c5_i32_110 : i32
    %187 = arith.index_cast %186 : i32 to index
    %188 = memref.load %arg1[%187] : memref<32xi32, #tpu.memory_space<smem>>
    %c0_i32_111 = arith.constant 0 : i32
    %189 = arith.cmpi slt, %188, %c0_i32_111 : i32
    %c0_i32_112 = arith.constant 0 : i32
    %190 = arith.maxsi %188, %c0_i32_112 : i32
    %191 = arith.index_cast %190 : i32 to index
    %c0_113 = arith.constant 0 : index
    %192 = vector.load %arg2[%191, %c0_113] : memref<32x128xf32, #tpu.memory_space<vmem>>, vector<1x128xf32>
    %c0_i32_114 = arith.constant 0 : i32
    %193 = arith.subi %c0_i32_114, %188 : i32
    %c1_i32_115 = arith.constant 1 : i32
    %194 = arith.subi %193, %c1_i32_115 : i32
    %c0_i32_116 = arith.constant 0 : i32
    %195 = arith.select %189, %194, %c0_i32_116 : i32
    %196 = arith.index_cast %195 : i32 to index
    %c0_117 = arith.constant 0 : index
    %197 = vector.load %arg3[%196, %c0_117] : memref<4x128xf32, #tpu.memory_space<vmem>>, vector<1x128xf32>
    %198 = arith.select %189, %197, %192 : vector<1x128xf32>
    %c8_i32_118 = arith.constant 8 : i32
    %199 = arith.addi %0, %c8_i32_118 : i32
    %c6_i32_119 = arith.constant 6 : i32
    %200 = arith.addi %199, %c6_i32_119 : i32
    %201 = arith.index_cast %200 : i32 to index
    %202 = memref.load %arg1[%201] : memref<32xi32, #tpu.memory_space<smem>>
    %c0_i32_120 = arith.constant 0 : i32
    %203 = arith.cmpi slt, %202, %c0_i32_120 : i32
    %c0_i32_121 = arith.constant 0 : i32
    %204 = arith.maxsi %202, %c0_i32_121 : i32
    %205 = arith.index_cast %204 : i32 to index
    %c0_122 = arith.constant 0 : index
    %206 = vector.load %arg2[%205, %c0_122] : memref<32x128xf32, #tpu.memory_space<vmem>>, vector<1x128xf32>
    %c0_i32_123 = arith.constant 0 : i32
    %207 = arith.subi %c0_i32_123, %202 : i32
    %c1_i32_124 = arith.constant 1 : i32
    %208 = arith.subi %207, %c1_i32_124 : i32
    %c0_i32_125 = arith.constant 0 : i32
    %209 = arith.select %203, %208, %c0_i32_125 : i32
    %210 = arith.index_cast %209 : i32 to index
    %c0_126 = arith.constant 0 : index
    %211 = vector.load %arg3[%210, %c0_126] : memref<4x128xf32, #tpu.memory_space<vmem>>, vector<1x128xf32>
    %212 = arith.select %203, %211, %206 : vector<1x128xf32>
    %c8_i32_127 = arith.constant 8 : i32
    %213 = arith.addi %0, %c8_i32_127 : i32
    %c7_i32_128 = arith.constant 7 : i32
    %214 = arith.addi %213, %c7_i32_128 : i32
    %215 = arith.index_cast %214 : i32 to index
    %216 = memref.load %arg1[%215] : memref<32xi32, #tpu.memory_space<smem>>
    %c0_i32_129 = arith.constant 0 : i32
    %217 = arith.cmpi slt, %216, %c0_i32_129 : i32
    %c0_i32_130 = arith.constant 0 : i32
    %218 = arith.maxsi %216, %c0_i32_130 : i32
    %219 = arith.index_cast %218 : i32 to index
    %c0_131 = arith.constant 0 : index
    %220 = vector.load %arg2[%219, %c0_131] : memref<32x128xf32, #tpu.memory_space<vmem>>, vector<1x128xf32>
    %c0_i32_132 = arith.constant 0 : i32
    %221 = arith.subi %c0_i32_132, %216 : i32
    %c1_i32_133 = arith.constant 1 : i32
    %222 = arith.subi %221, %c1_i32_133 : i32
    %c0_i32_134 = arith.constant 0 : i32
    %223 = arith.select %217, %222, %c0_i32_134 : i32
    %224 = arith.index_cast %223 : i32 to index
    %c0_135 = arith.constant 0 : index
    %225 = vector.load %arg3[%224, %c0_135] : memref<4x128xf32, #tpu.memory_space<vmem>>, vector<1x128xf32>
    %226 = arith.select %217, %225, %220 : vector<1x128xf32>
    %227 = tpu.concatenate %128, %142, %156, %170, %184, %198, %212, %226 in 0 : vector<1x128xf32>, vector<1x128xf32>, vector<1x128xf32>, vector<1x128xf32>, vector<1x128xf32>, vector<1x128xf32>, vector<1x128xf32>, vector<1x128xf32> -> vector<8x128xf32>
    %c8 = arith.constant 8 : index
    %c0_136 = arith.constant 0 : index
    %228 = vector.load %arg4[%c8, %c0_136] : memref<32x128xf32, #tpu.memory_space<vmem>>, vector<8x128xf32>
    tpu.vector_store %arg4[%c8, %c0_136], %227 {strides = array<i32>} : memref<32x128xf32, #tpu.memory_space<vmem>>, vector<8x128xf32>,
    %c16_i32 = arith.constant 16 : i32
    %229 = arith.addi %0, %c16_i32 : i32
    %c0_i32_137 = arith.constant 0 : i32
    %230 = arith.addi %229, %c0_i32_137 : i32
    %231 = arith.index_cast %230 : i32 to index
    %232 = memref.load %arg1[%231] : memref<32xi32, #tpu.memory_space<smem>>
    %c0_i32_138 = arith.constant 0 : i32
    %233 = arith.cmpi slt, %232, %c0_i32_138 : i32
    %c0_i32_139 = arith.constant 0 : i32
    %234 = arith.maxsi %232, %c0_i32_139 : i32
    %235 = arith.index_cast %234 : i32 to index
    %c0_140 = arith.constant 0 : index
    %236 = vector.load %arg2[%235, %c0_140] : memref<32x128xf32, #tpu.memory_space<vmem>>, vector<1x128xf32>
    %c0_i32_141 = arith.constant 0 : i32
    %237 = arith.subi %c0_i32_141, %232 : i32
    %c1_i32_142 = arith.constant 1 : i32
    %238 = arith.subi %237, %c1_i32_142 : i32
    %c0_i32_143 = arith.constant 0 : i32
    %239 = arith.select %233, %238, %c0_i32_143 : i32
    %240 = arith.index_cast %239 : i32 to index
    %c0_144 = arith.constant 0 : index
    %241 = vector.load %arg3[%240, %c0_144] : memref<4x128xf32, #tpu.memory_space<vmem>>, vector<1x128xf32>
    %242 = arith.select %233, %241, %236 : vector<1x128xf32>
    %c16_i32_145 = arith.constant 16 : i32
    %243 = arith.addi %0, %c16_i32_145 : i32
    %c1_i32_146 = arith.constant 1 : i32
    %244 = arith.addi %243, %c1_i32_146 : i32
    %245 = arith.index_cast %244 : i32 to index
    %246 = memref.load %arg1[%245] : memref<32xi32, #tpu.memory_space<smem>>
    %c0_i32_147 = arith.constant 0 : i32
    %247 = arith.cmpi slt, %246, %c0_i32_147 : i32
    %c0_i32_148 = arith.constant 0 : i32
    %248 = arith.maxsi %246, %c0_i32_148 : i32
    %249 = arith.index_cast %248 : i32 to index
    %c0_149 = arith.constant 0 : index
    %250 = vector.load %arg2[%249, %c0_149] : memref<32x128xf32, #tpu.memory_space<vmem>>, vector<1x128xf32>
    %c0_i32_150 = arith.constant 0 : i32
    %251 = arith.subi %c0_i32_150, %246 : i32
    %c1_i32_151 = arith.constant 1 : i32
    %252 = arith.subi %251, %c1_i32_151 : i32
    %c0_i32_152 = arith.constant 0 : i32
    %253 = arith.select %247, %252, %c0_i32_152 : i32
    %254 = arith.index_cast %253 : i32 to index
    %c0_153 = arith.constant 0 : index
    %255 = vector.load %arg3[%254, %c0_153] : memref<4x128xf32, #tpu.memory_space<vmem>>, vector<1x128xf32>
    %256 = arith.select %247, %255, %250 : vector<1x128xf32>
    %c16_i32_154 = arith.constant 16 : i32
    %257 = arith.addi %0, %c16_i32_154 : i32
    %c2_i32_155 = arith.constant 2 : i32
    %258 = arith.addi %257, %c2_i32_155 : i32
    %259 = arith.index_cast %258 : i32 to index
    %260 = memref.load %arg1[%259] : memref<32xi32, #tpu.memory_space<smem>>
    %c0_i32_156 = arith.constant 0 : i32
    %261 = arith.cmpi slt, %260, %c0_i32_156 : i32
    %c0_i32_157 = arith.constant 0 : i32
    %262 = arith.maxsi %260, %c0_i32_157 : i32
    %263 = arith.index_cast %262 : i32 to index
    %c0_158 = arith.constant 0 : index
    %264 = vector.load %arg2[%263, %c0_158] : memref<32x128xf32, #tpu.memory_space<vmem>>, vector<1x128xf32>
    %c0_i32_159 = arith.constant 0 : i32
    %265 = arith.subi %c0_i32_159, %260 : i32
    %c1_i32_160 = arith.constant 1 : i32
    %266 = arith.subi %265, %c1_i32_160 : i32
    %c0_i32_161 = arith.constant 0 : i32
    %267 = arith.select %261, %266, %c0_i32_161 : i32
    %268 = arith.index_cast %267 : i32 to index
    %c0_162 = arith.constant 0 : index
    %269 = vector.load %arg3[%268, %c0_162] : memref<4x128xf32, #tpu.memory_space<vmem>>, vector<1x128xf32>
    %270 = arith.select %261, %269, %264 : vector<1x128xf32>
    %c16_i32_163 = arith.constant 16 : i32
    %271 = arith.addi %0, %c16_i32_163 : i32
    %c3_i32_164 = arith.constant 3 : i32
    %272 = arith.addi %271, %c3_i32_164 : i32
    %273 = arith.index_cast %272 : i32 to index
    %274 = memref.load %arg1[%273] : memref<32xi32, #tpu.memory_space<smem>>
    %c0_i32_165 = arith.constant 0 : i32
    %275 = arith.cmpi slt, %274, %c0_i32_165 : i32
    %c0_i32_166 = arith.constant 0 : i32
    %276 = arith.maxsi %274, %c0_i32_166 : i32
    %277 = arith.index_cast %276 : i32 to index
    %c0_167 = arith.constant 0 : index
    %278 = vector.load %arg2[%277, %c0_167] : memref<32x128xf32, #tpu.memory_space<vmem>>, vector<1x128xf32>
    %c0_i32_168 = arith.constant 0 : i32
    %279 = arith.subi %c0_i32_168, %274 : i32
    %c1_i32_169 = arith.constant 1 : i32
    %280 = arith.subi %279, %c1_i32_169 : i32
    %c0_i32_170 = arith.constant 0 : i32
    %281 = arith.select %275, %280, %c0_i32_170 : i32
    %282 = arith.index_cast %281 : i32 to index
    %c0_171 = arith.constant 0 : index
    %283 = vector.load %arg3[%282, %c0_171] : memref<4x128xf32, #tpu.memory_space<vmem>>, vector<1x128xf32>
    %284 = arith.select %275, %283, %278 : vector<1x128xf32>
    %c16_i32_172 = arith.constant 16 : i32
    %285 = arith.addi %0, %c16_i32_172 : i32
    %c4_i32_173 = arith.constant 4 : i32
    %286 = arith.addi %285, %c4_i32_173 : i32
    %287 = arith.index_cast %286 : i32 to index
    %288 = memref.load %arg1[%287] : memref<32xi32, #tpu.memory_space<smem>>
    %c0_i32_174 = arith.constant 0 : i32
    %289 = arith.cmpi slt, %288, %c0_i32_174 : i32
    %c0_i32_175 = arith.constant 0 : i32
    %290 = arith.maxsi %288, %c0_i32_175 : i32
    %291 = arith.index_cast %290 : i32 to index
    %c0_176 = arith.constant 0 : index
    %292 = vector.load %arg2[%291, %c0_176] : memref<32x128xf32, #tpu.memory_space<vmem>>, vector<1x128xf32>
    %c0_i32_177 = arith.constant 0 : i32
    %293 = arith.subi %c0_i32_177, %288 : i32
    %c1_i32_178 = arith.constant 1 : i32
    %294 = arith.subi %293, %c1_i32_178 : i32
    %c0_i32_179 = arith.constant 0 : i32
    %295 = arith.select %289, %294, %c0_i32_179 : i32
    %296 = arith.index_cast %295 : i32 to index
    %c0_180 = arith.constant 0 : index
    %297 = vector.load %arg3[%296, %c0_180] : memref<4x128xf32, #tpu.memory_space<vmem>>, vector<1x128xf32>
    %298 = arith.select %289, %297, %292 : vector<1x128xf32>
    %c16_i32_181 = arith.constant 16 : i32
    %299 = arith.addi %0, %c16_i32_181 : i32
    %c5_i32_182 = arith.constant 5 : i32
    %300 = arith.addi %299, %c5_i32_182 : i32
    %301 = arith.index_cast %300 : i32 to index
    %302 = memref.load %arg1[%301] : memref<32xi32, #tpu.memory_space<smem>>
    %c0_i32_183 = arith.constant 0 : i32
    %303 = arith.cmpi slt, %302, %c0_i32_183 : i32
    %c0_i32_184 = arith.constant 0 : i32
    %304 = arith.maxsi %302, %c0_i32_184 : i32
    %305 = arith.index_cast %304 : i32 to index
    %c0_185 = arith.constant 0 : index
    %306 = vector.load %arg2[%305, %c0_185] : memref<32x128xf32, #tpu.memory_space<vmem>>, vector<1x128xf32>
    %c0_i32_186 = arith.constant 0 : i32
    %307 = arith.subi %c0_i32_186, %302 : i32
    %c1_i32_187 = arith.constant 1 : i32
    %308 = arith.subi %307, %c1_i32_187 : i32
    %c0_i32_188 = arith.constant 0 : i32
    %309 = arith.select %303, %308, %c0_i32_188 : i32
    %310 = arith.index_cast %309 : i32 to index
    %c0_189 = arith.constant 0 : index
    %311 = vector.load %arg3[%310, %c0_189] : memref<4x128xf32, #tpu.memory_space<vmem>>, vector<1x128xf32>
    %312 = arith.select %303, %311, %306 : vector<1x128xf32>
    %c16_i32_190 = arith.constant 16 : i32
    %313 = arith.addi %0, %c16_i32_190 : i32
    %c6_i32_191 = arith.constant 6 : i32
    %314 = arith.addi %313, %c6_i32_191 : i32
    %315 = arith.index_cast %314 : i32 to index
    %316 = memref.load %arg1[%315] : memref<32xi32, #tpu.memory_space<smem>>
    %c0_i32_192 = arith.constant 0 : i32
    %317 = arith.cmpi slt, %316, %c0_i32_192 : i32
    %c0_i32_193 = arith.constant 0 : i32
    %318 = arith.maxsi %316, %c0_i32_193 : i32
    %319 = arith.index_cast %318 : i32 to index
    %c0_194 = arith.constant 0 : index
    %320 = vector.load %arg2[%319, %c0_194] : memref<32x128xf32, #tpu.memory_space<vmem>>, vector<1x128xf32>
    %c0_i32_195 = arith.constant 0 : i32
    %321 = arith.subi %c0_i32_195, %316 : i32
    %c1_i32_196 = arith.constant 1 : i32
    %322 = arith.subi %321, %c1_i32_196 : i32
    %c0_i32_197 = arith.constant 0 : i32
    %323 = arith.select %317, %322, %c0_i32_197 : i32
    %324 = arith.index_cast %323 : i32 to index
    %c0_198 = arith.constant 0 : index
    %325 = vector.load %arg3[%324, %c0_198] : memref<4x128xf32, #tpu.memory_space<vmem>>, vector<1x128xf32>
    %326 = arith.select %317, %325, %320 : vector<1x128xf32>
    %c16_i32_199 = arith.constant 16 : i32
    %327 = arith.addi %0, %c16_i32_199 : i32
    %c7_i32_200 = arith.constant 7 : i32
    %328 = arith.addi %327, %c7_i32_200 : i32
    %329 = arith.index_cast %328 : i32 to index
    %330 = memref.load %arg1[%329] : memref<32xi32, #tpu.memory_space<smem>>
    %c0_i32_201 = arith.constant 0 : i32
    %331 = arith.cmpi slt, %330, %c0_i32_201 : i32
    %c0_i32_202 = arith.constant 0 : i32
    %332 = arith.maxsi %330, %c0_i32_202 : i32
    %333 = arith.index_cast %332 : i32 to index
    %c0_203 = arith.constant 0 : index
    %334 = vector.load %arg2[%333, %c0_203] : memref<32x128xf32, #tpu.memory_space<vmem>>, vector<1x128xf32>
    %c0_i32_204 = arith.constant 0 : i32
    %335 = arith.subi %c0_i32_204, %330 : i32
    %c1_i32_205 = arith.constant 1 : i32
    %336 = arith.subi %335, %c1_i32_205 : i32
    %c0_i32_206 = arith.constant 0 : i32
    %337 = arith.select %331, %336, %c0_i32_206 : i32
    %338 = arith.index_cast %337 : i32 to index
    %c0_207 = arith.constant 0 : index
    %339 = vector.load %arg3[%338, %c0_207] : memref<4x128xf32, #tpu.memory_space<vmem>>, vector<1x128xf32>
    %340 = arith.select %331, %339, %334 : vector<1x128xf32>
    %341 = tpu.concatenate %242, %256, %270, %284, %298, %312, %326, %340 in 0 : vector<1x128xf32>, vector<1x128xf32>, vector<1x128xf32>, vector<1x128xf32>, vector<1x128xf32>, vector<1x128xf32>, vector<1x128xf32>, vector<1x128xf32> -> vector<8x128xf32>
    %c16 = arith.constant 16 : index
    %c0_208 = arith.constant 0 : index
    %342 = vector.load %arg4[%c16, %c0_208] : memref<32x128xf32, #tpu.memory_space<vmem>>, vector<8x128xf32>
    tpu.vector_store %arg4[%c16, %c0_208], %341 {strides = array<i32>} : memref<32x128xf32, #tpu.memory_space<vmem>>, vector<8x128xf32>,
    %c24_i32 = arith.constant 24 : i32
    %343 = arith.addi %0, %c24_i32 : i32
    %c0_i32_209 = arith.constant 0 : i32
    %344 = arith.addi %343, %c0_i32_209 : i32
    %345 = arith.index_cast %344 : i32 to index
    %346 = memref.load %arg1[%345] : memref<32xi32, #tpu.memory_space<smem>>
    %c0_i32_210 = arith.constant 0 : i32
    %347 = arith.cmpi slt, %346, %c0_i32_210 : i32
    %c0_i32_211 = arith.constant 0 : i32
    %348 = arith.maxsi %346, %c0_i32_211 : i32
    %349 = arith.index_cast %348 : i32 to index
    %c0_212 = arith.constant 0 : index
    %350 = vector.load %arg2[%349, %c0_212] : memref<32x128xf32, #tpu.memory_space<vmem>>, vector<1x128xf32>
    %c0_i32_213 = arith.constant 0 : i32
    %351 = arith.subi %c0_i32_213, %346 : i32
    %c1_i32_214 = arith.constant 1 : i32
    %352 = arith.subi %351, %c1_i32_214 : i32
    %c0_i32_215 = arith.constant 0 : i32
    %353 = arith.select %347, %352, %c0_i32_215 : i32
    %354 = arith.index_cast %353 : i32 to index
    %c0_216 = arith.constant 0 : index
    %355 = vector.load %arg3[%354, %c0_216] : memref<4x128xf32, #tpu.memory_space<vmem>>, vector<1x128xf32>
    %356 = arith.select %347, %355, %350 : vector<1x128xf32>
    %c24_i32_217 = arith.constant 24 : i32
    %357 = arith.addi %0, %c24_i32_217 : i32
    %c1_i32_218 = arith.constant 1 : i32
    %358 = arith.addi %357, %c1_i32_218 : i32
    %359 = arith.index_cast %358 : i32 to index
    %360 = memref.load %arg1[%359] : memref<32xi32, #tpu.memory_space<smem>>
    %c0_i32_219 = arith.constant 0 : i32
    %361 = arith.cmpi slt, %360, %c0_i32_219 : i32
    %c0_i32_220 = arith.constant 0 : i32
    %362 = arith.maxsi %360, %c0_i32_220 : i32
    %363 = arith.index_cast %362 : i32 to index
    %c0_221 = arith.constant 0 : index
    %364 = vector.load %arg2[%363, %c0_221] : memref<32x128xf32, #tpu.memory_space<vmem>>, vector<1x128xf32>
    %c0_i32_222 = arith.constant 0 : i32
    %365 = arith.subi %c0_i32_222, %360 : i32
    %c1_i32_223 = arith.constant 1 : i32
    %366 = arith.subi %365, %c1_i32_223 : i32
    %c0_i32_224 = arith.constant 0 : i32
    %367 = arith.select %361, %366, %c0_i32_224 : i32
    %368 = arith.index_cast %367 : i32 to index
    %c0_225 = arith.constant 0 : index
    %369 = vector.load %arg3[%368, %c0_225] : memref<4x128xf32, #tpu.memory_space<vmem>>, vector<1x128xf32>
    %370 = arith.select %361, %369, %364 : vector<1x128xf32>
    %c24_i32_226 = arith.constant 24 : i32
    %371 = arith.addi %0, %c24_i32_226 : i32
    %c2_i32_227 = arith.constant 2 : i32
    %372 = arith.addi %371, %c2_i32_227 : i32
    %373 = arith.index_cast %372 : i32 to index
    %374 = memref.load %arg1[%373] : memref<32xi32, #tpu.memory_space<smem>>
    %c0_i32_228 = arith.constant 0 : i32
    %375 = arith.cmpi slt, %374, %c0_i32_228 : i32
    %c0_i32_229 = arith.constant 0 : i32
    %376 = arith.maxsi %374, %c0_i32_229 : i32
    %377 = arith.index_cast %376 : i32 to index
    %c0_230 = arith.constant 0 : index
    %378 = vector.load %arg2[%377, %c0_230] : memref<32x128xf32, #tpu.memory_space<vmem>>, vector<1x128xf32>
    %c0_i32_231 = arith.constant 0 : i32
    %379 = arith.subi %c0_i32_231, %374 : i32
    %c1_i32_232 = arith.constant 1 : i32
    %380 = arith.subi %379, %c1_i32_232 : i32
    %c0_i32_233 = arith.constant 0 : i32
    %381 = arith.select %375, %380, %c0_i32_233 : i32
    %382 = arith.index_cast %381 : i32 to index
    %c0_234 = arith.constant 0 : index
    %383 = vector.load %arg3[%382, %c0_234] : memref<4x128xf32, #tpu.memory_space<vmem>>, vector<1x128xf32>
    %384 = arith.select %375, %383, %378 : vector<1x128xf32>
    %c24_i32_235 = arith.constant 24 : i32
    %385 = arith.addi %0, %c24_i32_235 : i32
    %c3_i32_236 = arith.constant 3 : i32
    %386 = arith.addi %385, %c3_i32_236 : i32
    %387 = arith.index_cast %386 : i32 to index
    %388 = memref.load %arg1[%387] : memref<32xi32, #tpu.memory_space<smem>>
    %c0_i32_237 = arith.constant 0 : i32
    %389 = arith.cmpi slt, %388, %c0_i32_237 : i32
    %c0_i32_238 = arith.constant 0 : i32
    %390 = arith.maxsi %388, %c0_i32_238 : i32
    %391 = arith.index_cast %390 : i32 to index
    %c0_239 = arith.constant 0 : index
    %392 = vector.load %arg2[%391, %c0_239] : memref<32x128xf32, #tpu.memory_space<vmem>>, vector<1x128xf32>
    %c0_i32_240 = arith.constant 0 : i32
    %393 = arith.subi %c0_i32_240, %388 : i32
    %c1_i32_241 = arith.constant 1 : i32
    %394 = arith.subi %393, %c1_i32_241 : i32
    %c0_i32_242 = arith.constant 0 : i32
    %395 = arith.select %389, %394, %c0_i32_242 : i32
    %396 = arith.index_cast %395 : i32 to index
    %c0_243 = arith.constant 0 : index
    %397 = vector.load %arg3[%396, %c0_243] : memref<4x128xf32, #tpu.memory_space<vmem>>, vector<1x128xf32>
    %398 = arith.select %389, %397, %392 : vector<1x128xf32>
    %c24_i32_244 = arith.constant 24 : i32
    %399 = arith.addi %0, %c24_i32_244 : i32
    %c4_i32_245 = arith.constant 4 : i32
    %400 = arith.addi %399, %c4_i32_245 : i32
    %401 = arith.index_cast %400 : i32 to index
    %402 = memref.load %arg1[%401] : memref<32xi32, #tpu.memory_space<smem>>
    %c0_i32_246 = arith.constant 0 : i32
    %403 = arith.cmpi slt, %402, %c0_i32_246 : i32
    %c0_i32_247 = arith.constant 0 : i32
    %404 = arith.maxsi %402, %c0_i32_247 : i32
    %405 = arith.index_cast %404 : i32 to index
    %c0_248 = arith.constant 0 : index
    %406 = vector.load %arg2[%405, %c0_248] : memref<32x128xf32, #tpu.memory_space<vmem>>, vector<1x128xf32>
    %c0_i32_249 = arith.constant 0 : i32
    %407 = arith.subi %c0_i32_249, %402 : i32
    %c1_i32_250 = arith.constant 1 : i32
    %408 = arith.subi %407, %c1_i32_250 : i32
    %c0_i32_251 = arith.constant 0 : i32
    %409 = arith.select %403, %408, %c0_i32_251 : i32
    %410 = arith.index_cast %409 : i32 to index
    %c0_252 = arith.constant 0 : index
    %411 = vector.load %arg3[%410, %c0_252] : memref<4x128xf32, #tpu.memory_space<vmem>>, vector<1x128xf32>
    %412 = arith.select %403, %411, %406 : vector<1x128xf32>
    %c24_i32_253 = arith.constant 24 : i32
    %413 = arith.addi %0, %c24_i32_253 : i32
    %c5_i32_254 = arith.constant 5 : i32
    %414 = arith.addi %413, %c5_i32_254 : i32
    %415 = arith.index_cast %414 : i32 to index
    %416 = memref.load %arg1[%415] : memref<32xi32, #tpu.memory_space<smem>>
    %c0_i32_255 = arith.constant 0 : i32
    %417 = arith.cmpi slt, %416, %c0_i32_255 : i32
    %c0_i32_256 = arith.constant 0 : i32
    %418 = arith.maxsi %416, %c0_i32_256 : i32
    %419 = arith.index_cast %418 : i32 to index
    %c0_257 = arith.constant 0 : index
    %420 = vector.load %arg2[%419, %c0_257] : memref<32x128xf32, #tpu.memory_space<vmem>>, vector<1x128xf32>
    %c0_i32_258 = arith.constant 0 : i32
    %421 = arith.subi %c0_i32_258, %416 : i32
    %c1_i32_259 = arith.constant 1 : i32
    %422 = arith.subi %421, %c1_i32_259 : i32
    %c0_i32_260 = arith.constant 0 : i32
    %423 = arith.select %417, %422, %c0_i32_260 : i32
    %424 = arith.index_cast %423 : i32 to index
    %c0_261 = arith.constant 0 : index
    %425 = vector.load %arg3[%424, %c0_261] : memref<4x128xf32, #tpu.memory_space<vmem>>, vector<1x128xf32>
    %426 = arith.select %417, %425, %420 : vector<1x128xf32>
    %c24_i32_262 = arith.constant 24 : i32
    %427 = arith.addi %0, %c24_i32_262 : i32
    %c6_i32_263 = arith.constant 6 : i32
    %428 = arith.addi %427, %c6_i32_263 : i32
    %429 = arith.index_cast %428 : i32 to index
    %430 = memref.load %arg1[%429] : memref<32xi32, #tpu.memory_space<smem>>
    %c0_i32_264 = arith.constant 0 : i32
    %431 = arith.cmpi slt, %430, %c0_i32_264 : i32
    %c0_i32_265 = arith.constant 0 : i32
    %432 = arith.maxsi %430, %c0_i32_265 : i32
    %433 = arith.index_cast %432 : i32 to index
    %c0_266 = arith.constant 0 : index
    %434 = vector.load %arg2[%433, %c0_266] : memref<32x128xf32, #tpu.memory_space<vmem>>, vector<1x128xf32>
    %c0_i32_267 = arith.constant 0 : i32
    %435 = arith.subi %c0_i32_267, %430 : i32
    %c1_i32_268 = arith.constant 1 : i32
    %436 = arith.subi %435, %c1_i32_268 : i32
    %c0_i32_269 = arith.constant 0 : i32
    %437 = arith.select %431, %436, %c0_i32_269 : i32
    %438 = arith.index_cast %437 : i32 to index
    %c0_270 = arith.constant 0 : index
    %439 = vector.load %arg3[%438, %c0_270] : memref<4x128xf32, #tpu.memory_space<vmem>>, vector<1x128xf32>
    %440 = arith.select %431, %439, %434 : vector<1x128xf32>
    %c24_i32_271 = arith.constant 24 : i32
    %441 = arith.addi %0, %c24_i32_271 : i32
    %c7_i32_272 = arith.constant 7 : i32
    %442 = arith.addi %441, %c7_i32_272 : i32
    %443 = arith.index_cast %442 : i32 to index
    %444 = memref.load %arg1[%443] : memref<32xi32, #tpu.memory_space<smem>>
    %c0_i32_273 = arith.constant 0 : i32
    %445 = arith.cmpi slt, %444, %c0_i32_273 : i32
    %c0_i32_274 = arith.constant 0 : i32
    %446 = arith.maxsi %444, %c0_i32_274 : i32
    %447 = arith.index_cast %446 : i32 to index
    %c0_275 = arith.constant 0 : index
    %448 = vector.load %arg2[%447, %c0_275] : memref<32x128xf32, #tpu.memory_space<vmem>>, vector<1x128xf32>
    %c0_i32_276 = arith.constant 0 : i32
    %449 = arith.subi %c0_i32_276, %444 : i32
    %c1_i32_277 = arith.constant 1 : i32
    %450 = arith.subi %449, %c1_i32_277 : i32
    %c0_i32_278 = arith.constant 0 : i32
    %451 = arith.select %445, %450, %c0_i32_278 : i32
    %452 = arith.index_cast %451 : i32 to index
    %c0_279 = arith.constant 0 : index
    %453 = vector.load %arg3[%452, %c0_279] : memref<4x128xf32, #tpu.memory_space<vmem>>, vector<1x128xf32>
    %454 = arith.select %445, %453, %448 : vector<1x128xf32>
    %455 = tpu.concatenate %356, %370, %384, %398, %412, %426, %440, %454 in 0 : vector<1x128xf32>, vector<1x128xf32>, vector<1x128xf32>, vector<1x128xf32>, vector<1x128xf32>, vector<1x128xf32>, vector<1x128xf32>, vector<1x128xf32> -> vector<8x128xf32>
    %c24 = arith.constant 24 : index
    %c0_280 = arith.constant 0 : index
    %456 = vector.load %arg4[%c24, %c0_280] : memref<32x128xf32, #tpu.memory_space<vmem>>, vector<8x128xf32>
    tpu.vector_store %arg4[%c24, %c0_280], %455 {strides = array<i32>} : memref<32x128xf32, #tpu.memory_space<vmem>>, vector<8x128xf32>,
    return
  }
  func.func @transform_0(%arg0: i32, %arg1: memref<32xi32, #tpu.memory_space<smem>>) -> (i32, i32) {
    %c0_i32 = arith.constant 0 : i32
    %c0_i32_0 = arith.constant 0 : i32
    %c0_i32_1 = arith.constant 0 : i32
    return %c0_i32, %c0_i32_0 : i32, i32
  }
  func.func @transform_1(%arg0: i32, %arg1: memref<32xi32, #tpu.memory_space<smem>>) -> (i32, i32) {
    %c0_i32 = arith.constant 0 : i32
    %c0_i32_0 = arith.constant 0 : i32
    %c0_i32_1 = arith.constant 0 : i32
    return %c0_i32, %c0_i32_0 : i32, i32
  }
  func.func @transform_2(%arg0: i32, %arg1: memref<32xi32, #tpu.memory_space<smem>>) -> (i32, i32) {
    %c0_i32 = arith.constant 0 : i32
    %c0_i32_0 = arith.constant 0 : i32
    return %arg0, %c0_i32 : i32, i32
  }
}

module attributes {stable_mosaic.version = 11 : i64} {
  func.func @kernel(%arg0: i32, %arg1: memref<32xi32, #tpu.memory_space<smem>>, %arg2: memref<32x128xf32, #tpu.memory_space<vmem>>, %arg3: memref<4x128xf32, #tpu.memory_space<vmem>>, %arg4: memref<32x128xf32, #tpu.memory_space<vmem>>) attributes {dimension_semantics = [#tpu.dimension_semantics<parallel>], iteration_bounds = array<i64: 1>, scalar_prefetch = 1 : i64, scratch_operands = 0 : i64, tpu.core_type = #tpu.core_type<tc>, window_params = [{pipeline_mode = #tpu.pipeline_mode<synchronous>, transform_indices = @transform_0, window_bounds = array<i64: 32, 128>}, {pipeline_mode = #tpu.pipeline_mode<synchronous>, transform_indices = @transform_1, window_bounds = array<i64: 4, 128>}, {transform_indices = @transform_2, window_bounds = array<i64: 32, 128>}]} {
    %c32_i32 = arith.constant 32 : i32
    %0 = arith.muli %arg0, %c32_i32 : i32
    %c0_i32 = arith.constant 0 : i32
    %1 = arith.addi %0, %c0_i32 : i32
    %c0_i32_0 = arith.constant 0 : i32
    %2 = arith.addi %1, %c0_i32_0 : i32
    %3 = arith.index_cast %2 : i32 to index
    %4 = memref.load %arg1[%3] : memref<32xi32, #tpu.memory_space<smem>>
    %c0_i32_1 = arith.constant 0 : i32
    %5 = arith.cmpi slt, %4, %c0_i32_1 : i32
    %c0_i32_2 = arith.constant 0 : i32
    %6 = arith.maxsi %4, %c0_i32_2 : i32
    %7 = arith.index_cast %6 : i32 to index
    %c0 = arith.constant 0 : index
    %8 = vector.load %arg2[%7, %c0] : memref<32x128xf32, #tpu.memory_space<vmem>>, vector<1x128xf32>
    %c0_i32_3 = arith.constant 0 : i32
    %9 = arith.subi %c0_i32_3, %4 : i32
    %c1_i32 = arith.constant 1 : i32
    %10 = arith.subi %9, %c1_i32 : i32
    %c0_i32_4 = arith.constant 0 : i32
    %11 = arith.select %5, %10, %c0_i32_4 : i32
    %12 = arith.index_cast %11 : i32 to index
    %c0_5 = arith.constant 0 : index
    %13 = vector.load %arg3[%12, %c0_5] : memref<4x128xf32, #tpu.memory_space<vmem>>, vector<1x128xf32>
    %14 = arith.select %5, %13, %8 : vector<1x128xf32>
    %c0_6 = arith.constant 0 : index
    %c0_7 = arith.constant 0 : index
    %15 = vector.load %arg4[%c0_6, %c0_7] : memref<32x128xf32, #tpu.memory_space<vmem>>, vector<1x128xf32>
    tpu.vector_store %arg4[%c0_6, %c0_7], %14 {strides = array<i32>} : memref<32x128xf32, #tpu.memory_space<vmem>>, vector<1x128xf32>,
    %c1_i32_8 = arith.constant 1 : i32
    %16 = arith.addi %0, %c1_i32_8 : i32
    %c0_i32_9 = arith.constant 0 : i32
    %17 = arith.addi %16, %c0_i32_9 : i32
    %18 = arith.index_cast %17 : i32 to index
    %19 = memref.load %arg1[%18] : memref<32xi32, #tpu.memory_space<smem>>
    %c0_i32_10 = arith.constant 0 : i32
    %20 = arith.cmpi slt, %19, %c0_i32_10 : i32
    %c0_i32_11 = arith.constant 0 : i32
    %21 = arith.maxsi %19, %c0_i32_11 : i32
    %22 = arith.index_cast %21 : i32 to index
    %c0_12 = arith.constant 0 : index
    %23 = vector.load %arg2[%22, %c0_12] : memref<32x128xf32, #tpu.memory_space<vmem>>, vector<1x128xf32>
    %c0_i32_13 = arith.constant 0 : i32
    %24 = arith.subi %c0_i32_13, %19 : i32
    %c1_i32_14 = arith.constant 1 : i32
    %25 = arith.subi %24, %c1_i32_14 : i32
    %c0_i32_15 = arith.constant 0 : i32
    %26 = arith.select %20, %25, %c0_i32_15 : i32
    %27 = arith.index_cast %26 : i32 to index
    %c0_16 = arith.constant 0 : index
    %28 = vector.load %arg3[%27, %c0_16] : memref<4x128xf32, #tpu.memory_space<vmem>>, vector<1x128xf32>
    %29 = arith.select %20, %28, %23 : vector<1x128xf32>
    %c1 = arith.constant 1 : index
    %c0_17 = arith.constant 0 : index
    %30 = vector.load %arg4[%c1, %c0_17] : memref<32x128xf32, #tpu.memory_space<vmem>>, vector<1x128xf32>
    tpu.vector_store %arg4[%c1, %c0_17], %29 {strides = array<i32>} : memref<32x128xf32, #tpu.memory_space<vmem>>, vector<1x128xf32>,
    %c2_i32 = arith.constant 2 : i32
    %31 = arith.addi %0, %c2_i32 : i32
    %c0_i32_18 = arith.constant 0 : i32
    %32 = arith.addi %31, %c0_i32_18 : i32
    %33 = arith.index_cast %32 : i32 to index
    %34 = memref.load %arg1[%33] : memref<32xi32, #tpu.memory_space<smem>>
    %c0_i32_19 = arith.constant 0 : i32
    %35 = arith.cmpi slt, %34, %c0_i32_19 : i32
    %c0_i32_20 = arith.constant 0 : i32
    %36 = arith.maxsi %34, %c0_i32_20 : i32
    %37 = arith.index_cast %36 : i32 to index
    %c0_21 = arith.constant 0 : index
    %38 = vector.load %arg2[%37, %c0_21] : memref<32x128xf32, #tpu.memory_space<vmem>>, vector<1x128xf32>
    %c0_i32_22 = arith.constant 0 : i32
    %39 = arith.subi %c0_i32_22, %34 : i32
    %c1_i32_23 = arith.constant 1 : i32
    %40 = arith.subi %39, %c1_i32_23 : i32
    %c0_i32_24 = arith.constant 0 : i32
    %41 = arith.select %35, %40, %c0_i32_24 : i32
    %42 = arith.index_cast %41 : i32 to index
    %c0_25 = arith.constant 0 : index
    %43 = vector.load %arg3[%42, %c0_25] : memref<4x128xf32, #tpu.memory_space<vmem>>, vector<1x128xf32>
    %44 = arith.select %35, %43, %38 : vector<1x128xf32>
    %c2 = arith.constant 2 : index
    %c0_26 = arith.constant 0 : index
    %45 = vector.load %arg4[%c2, %c0_26] : memref<32x128xf32, #tpu.memory_space<vmem>>, vector<1x128xf32>
    tpu.vector_store %arg4[%c2, %c0_26], %44 {strides = array<i32>} : memref<32x128xf32, #tpu.memory_space<vmem>>, vector<1x128xf32>,
    %c3_i32 = arith.constant 3 : i32
    %46 = arith.addi %0, %c3_i32 : i32
    %c0_i32_27 = arith.constant 0 : i32
    %47 = arith.addi %46, %c0_i32_27 : i32
    %48 = arith.index_cast %47 : i32 to index
    %49 = memref.load %arg1[%48] : memref<32xi32, #tpu.memory_space<smem>>
    %c0_i32_28 = arith.constant 0 : i32
    %50 = arith.cmpi slt, %49, %c0_i32_28 : i32
    %c0_i32_29 = arith.constant 0 : i32
    %51 = arith.maxsi %49, %c0_i32_29 : i32
    %52 = arith.index_cast %51 : i32 to index
    %c0_30 = arith.constant 0 : index
    %53 = vector.load %arg2[%52, %c0_30] : memref<32x128xf32, #tpu.memory_space<vmem>>, vector<1x128xf32>
    %c0_i32_31 = arith.constant 0 : i32
    %54 = arith.subi %c0_i32_31, %49 : i32
    %c1_i32_32 = arith.constant 1 : i32
    %55 = arith.subi %54, %c1_i32_32 : i32
    %c0_i32_33 = arith.constant 0 : i32
    %56 = arith.select %50, %55, %c0_i32_33 : i32
    %57 = arith.index_cast %56 : i32 to index
    %c0_34 = arith.constant 0 : index
    %58 = vector.load %arg3[%57, %c0_34] : memref<4x128xf32, #tpu.memory_space<vmem>>, vector<1x128xf32>
    %59 = arith.select %50, %58, %53 : vector<1x128xf32>
    %c3 = arith.constant 3 : index
    %c0_35 = arith.constant 0 : index
    %60 = vector.load %arg4[%c3, %c0_35] : memref<32x128xf32, #tpu.memory_space<vmem>>, vector<1x128xf32>
    tpu.vector_store %arg4[%c3, %c0_35], %59 {strides = array<i32>} : memref<32x128xf32, #tpu.memory_space<vmem>>, vector<1x128xf32>,
    %c4_i32 = arith.constant 4 : i32
    %61 = arith.addi %0, %c4_i32 : i32
    %c0_i32_36 = arith.constant 0 : i32
    %62 = arith.addi %61, %c0_i32_36 : i32
    %63 = arith.index_cast %62 : i32 to index
    %64 = memref.load %arg1[%63] : memref<32xi32, #tpu.memory_space<smem>>
    %c0_i32_37 = arith.constant 0 : i32
    %65 = arith.cmpi slt, %64, %c0_i32_37 : i32
    %c0_i32_38 = arith.constant 0 : i32
    %66 = arith.maxsi %64, %c0_i32_38 : i32
    %67 = arith.index_cast %66 : i32 to index
    %c0_39 = arith.constant 0 : index
    %68 = vector.load %arg2[%67, %c0_39] : memref<32x128xf32, #tpu.memory_space<vmem>>, vector<1x128xf32>
    %c0_i32_40 = arith.constant 0 : i32
    %69 = arith.subi %c0_i32_40, %64 : i32
    %c1_i32_41 = arith.constant 1 : i32
    %70 = arith.subi %69, %c1_i32_41 : i32
    %c0_i32_42 = arith.constant 0 : i32
    %71 = arith.select %65, %70, %c0_i32_42 : i32
    %72 = arith.index_cast %71 : i32 to index
    %c0_43 = arith.constant 0 : index
    %73 = vector.load %arg3[%72, %c0_43] : memref<4x128xf32, #tpu.memory_space<vmem>>, vector<1x128xf32>
    %74 = arith.select %65, %73, %68 : vector<1x128xf32>
    %c4 = arith.constant 4 : index
    %c0_44 = arith.constant 0 : index
    %75 = vector.load %arg4[%c4, %c0_44] : memref<32x128xf32, #tpu.memory_space<vmem>>, vector<1x128xf32>
    tpu.vector_store %arg4[%c4, %c0_44], %74 {strides = array<i32>} : memref<32x128xf32, #tpu.memory_space<vmem>>, vector<1x128xf32>,
    %c5_i32 = arith.constant 5 : i32
    %76 = arith.addi %0, %c5_i32 : i32
    %c0_i32_45 = arith.constant 0 : i32
    %77 = arith.addi %76, %c0_i32_45 : i32
    %78 = arith.index_cast %77 : i32 to index
    %79 = memref.load %arg1[%78] : memref<32xi32, #tpu.memory_space<smem>>
    %c0_i32_46 = arith.constant 0 : i32
    %80 = arith.cmpi slt, %79, %c0_i32_46 : i32
    %c0_i32_47 = arith.constant 0 : i32
    %81 = arith.maxsi %79, %c0_i32_47 : i32
    %82 = arith.index_cast %81 : i32 to index
    %c0_48 = arith.constant 0 : index
    %83 = vector.load %arg2[%82, %c0_48] : memref<32x128xf32, #tpu.memory_space<vmem>>, vector<1x128xf32>
    %c0_i32_49 = arith.constant 0 : i32
    %84 = arith.subi %c0_i32_49, %79 : i32
    %c1_i32_50 = arith.constant 1 : i32
    %85 = arith.subi %84, %c1_i32_50 : i32
    %c0_i32_51 = arith.constant 0 : i32
    %86 = arith.select %80, %85, %c0_i32_51 : i32
    %87 = arith.index_cast %86 : i32 to index
    %c0_52 = arith.constant 0 : index
    %88 = vector.load %arg3[%87, %c0_52] : memref<4x128xf32, #tpu.memory_space<vmem>>, vector<1x128xf32>
    %89 = arith.select %80, %88, %83 : vector<1x128xf32>
    %c5 = arith.constant 5 : index
    %c0_53 = arith.constant 0 : index
    %90 = vector.load %arg4[%c5, %c0_53] : memref<32x128xf32, #tpu.memory_space<vmem>>, vector<1x128xf32>
    tpu.vector_store %arg4[%c5, %c0_53], %89 {strides = array<i32>} : memref<32x128xf32, #tpu.memory_space<vmem>>, vector<1x128xf32>,
    %c6_i32 = arith.constant 6 : i32
    %91 = arith.addi %0, %c6_i32 : i32
    %c0_i32_54 = arith.constant 0 : i32
    %92 = arith.addi %91, %c0_i32_54 : i32
    %93 = arith.index_cast %92 : i32 to index
    %94 = memref.load %arg1[%93] : memref<32xi32, #tpu.memory_space<smem>>
    %c0_i32_55 = arith.constant 0 : i32
    %95 = arith.cmpi slt, %94, %c0_i32_55 : i32
    %c0_i32_56 = arith.constant 0 : i32
    %96 = arith.maxsi %94, %c0_i32_56 : i32
    %97 = arith.index_cast %96 : i32 to index
    %c0_57 = arith.constant 0 : index
    %98 = vector.load %arg2[%97, %c0_57] : memref<32x128xf32, #tpu.memory_space<vmem>>, vector<1x128xf32>
    %c0_i32_58 = arith.constant 0 : i32
    %99 = arith.subi %c0_i32_58, %94 : i32
    %c1_i32_59 = arith.constant 1 : i32
    %100 = arith.subi %99, %c1_i32_59 : i32
    %c0_i32_60 = arith.constant 0 : i32
    %101 = arith.select %95, %100, %c0_i32_60 : i32
    %102 = arith.index_cast %101 : i32 to index
    %c0_61 = arith.constant 0 : index
    %103 = vector.load %arg3[%102, %c0_61] : memref<4x128xf32, #tpu.memory_space<vmem>>, vector<1x128xf32>
    %104 = arith.select %95, %103, %98 : vector<1x128xf32>
    %c6 = arith.constant 6 : index
    %c0_62 = arith.constant 0 : index
    %105 = vector.load %arg4[%c6, %c0_62] : memref<32x128xf32, #tpu.memory_space<vmem>>, vector<1x128xf32>
    tpu.vector_store %arg4[%c6, %c0_62], %104 {strides = array<i32>} : memref<32x128xf32, #tpu.memory_space<vmem>>, vector<1x128xf32>,
    %c7_i32 = arith.constant 7 : i32
    %106 = arith.addi %0, %c7_i32 : i32
    %c0_i32_63 = arith.constant 0 : i32
    %107 = arith.addi %106, %c0_i32_63 : i32
    %108 = arith.index_cast %107 : i32 to index
    %109 = memref.load %arg1[%108] : memref<32xi32, #tpu.memory_space<smem>>
    %c0_i32_64 = arith.constant 0 : i32
    %110 = arith.cmpi slt, %109, %c0_i32_64 : i32
    %c0_i32_65 = arith.constant 0 : i32
    %111 = arith.maxsi %109, %c0_i32_65 : i32
    %112 = arith.index_cast %111 : i32 to index
    %c0_66 = arith.constant 0 : index
    %113 = vector.load %arg2[%112, %c0_66] : memref<32x128xf32, #tpu.memory_space<vmem>>, vector<1x128xf32>
    %c0_i32_67 = arith.constant 0 : i32
    %114 = arith.subi %c0_i32_67, %109 : i32
    %c1_i32_68 = arith.constant 1 : i32
    %115 = arith.subi %114, %c1_i32_68 : i32
    %c0_i32_69 = arith.constant 0 : i32
    %116 = arith.select %110, %115, %c0_i32_69 : i32
    %117 = arith.index_cast %116 : i32 to index
    %c0_70 = arith.constant 0 : index
    %118 = vector.load %arg3[%117, %c0_70] : memref<4x128xf32, #tpu.memory_space<vmem>>, vector<1x128xf32>
    %119 = arith.select %110, %118, %113 : vector<1x128xf32>
    %c7 = arith.constant 7 : index
    %c0_71 = arith.constant 0 : index
    %120 = vector.load %arg4[%c7, %c0_71] : memref<32x128xf32, #tpu.memory_space<vmem>>, vector<1x128xf32>
    tpu.vector_store %arg4[%c7, %c0_71], %119 {strides = array<i32>} : memref<32x128xf32, #tpu.memory_space<vmem>>, vector<1x128xf32>,
    %c8_i32 = arith.constant 8 : i32
    %121 = arith.addi %0, %c8_i32 : i32
    %c0_i32_72 = arith.constant 0 : i32
    %122 = arith.addi %121, %c0_i32_72 : i32
    %123 = arith.index_cast %122 : i32 to index
    %124 = memref.load %arg1[%123] : memref<32xi32, #tpu.memory_space<smem>>
    %c0_i32_73 = arith.constant 0 : i32
    %125 = arith.cmpi slt, %124, %c0_i32_73 : i32
    %c0_i32_74 = arith.constant 0 : i32
    %126 = arith.maxsi %124, %c0_i32_74 : i32
    %127 = arith.index_cast %126 : i32 to index
    %c0_75 = arith.constant 0 : index
    %128 = vector.load %arg2[%127, %c0_75] : memref<32x128xf32, #tpu.memory_space<vmem>>, vector<1x128xf32>
    %c0_i32_76 = arith.constant 0 : i32
    %129 = arith.subi %c0_i32_76, %124 : i32
    %c1_i32_77 = arith.constant 1 : i32
    %130 = arith.subi %129, %c1_i32_77 : i32
    %c0_i32_78 = arith.constant 0 : i32
    %131 = arith.select %125, %130, %c0_i32_78 : i32
    %132 = arith.index_cast %131 : i32 to index
    %c0_79 = arith.constant 0 : index
    %133 = vector.load %arg3[%132, %c0_79] : memref<4x128xf32, #tpu.memory_space<vmem>>, vector<1x128xf32>
    %134 = arith.select %125, %133, %128 : vector<1x128xf32>
    %c8 = arith.constant 8 : index
    %c0_80 = arith.constant 0 : index
    %135 = vector.load %arg4[%c8, %c0_80] : memref<32x128xf32, #tpu.memory_space<vmem>>, vector<1x128xf32>
    tpu.vector_store %arg4[%c8, %c0_80], %134 {strides = array<i32>} : memref<32x128xf32, #tpu.memory_space<vmem>>, vector<1x128xf32>,
    %c9_i32 = arith.constant 9 : i32
    %136 = arith.addi %0, %c9_i32 : i32
    %c0_i32_81 = arith.constant 0 : i32
    %137 = arith.addi %136, %c0_i32_81 : i32
    %138 = arith.index_cast %137 : i32 to index
    %139 = memref.load %arg1[%138] : memref<32xi32, #tpu.memory_space<smem>>
    %c0_i32_82 = arith.constant 0 : i32
    %140 = arith.cmpi slt, %139, %c0_i32_82 : i32
    %c0_i32_83 = arith.constant 0 : i32
    %141 = arith.maxsi %139, %c0_i32_83 : i32
    %142 = arith.index_cast %141 : i32 to index
    %c0_84 = arith.constant 0 : index
    %143 = vector.load %arg2[%142, %c0_84] : memref<32x128xf32, #tpu.memory_space<vmem>>, vector<1x128xf32>
    %c0_i32_85 = arith.constant 0 : i32
    %144 = arith.subi %c0_i32_85, %139 : i32
    %c1_i32_86 = arith.constant 1 : i32
    %145 = arith.subi %144, %c1_i32_86 : i32
    %c0_i32_87 = arith.constant 0 : i32
    %146 = arith.select %140, %145, %c0_i32_87 : i32
    %147 = arith.index_cast %146 : i32 to index
    %c0_88 = arith.constant 0 : index
    %148 = vector.load %arg3[%147, %c0_88] : memref<4x128xf32, #tpu.memory_space<vmem>>, vector<1x128xf32>
    %149 = arith.select %140, %148, %143 : vector<1x128xf32>
    %c9 = arith.constant 9 : index
    %c0_89 = arith.constant 0 : index
    %150 = vector.load %arg4[%c9, %c0_89] : memref<32x128xf32, #tpu.memory_space<vmem>>, vector<1x128xf32>
    tpu.vector_store %arg4[%c9, %c0_89], %149 {strides = array<i32>} : memref<32x128xf32, #tpu.memory_space<vmem>>, vector<1x128xf32>,
    %c10_i32 = arith.constant 10 : i32
    %151 = arith.addi %0, %c10_i32 : i32
    %c0_i32_90 = arith.constant 0 : i32
    %152 = arith.addi %151, %c0_i32_90 : i32
    %153 = arith.index_cast %152 : i32 to index
    %154 = memref.load %arg1[%153] : memref<32xi32, #tpu.memory_space<smem>>
    %c0_i32_91 = arith.constant 0 : i32
    %155 = arith.cmpi slt, %154, %c0_i32_91 : i32
    %c0_i32_92 = arith.constant 0 : i32
    %156 = arith.maxsi %154, %c0_i32_92 : i32
    %157 = arith.index_cast %156 : i32 to index
    %c0_93 = arith.constant 0 : index
    %158 = vector.load %arg2[%157, %c0_93] : memref<32x128xf32, #tpu.memory_space<vmem>>, vector<1x128xf32>
    %c0_i32_94 = arith.constant 0 : i32
    %159 = arith.subi %c0_i32_94, %154 : i32
    %c1_i32_95 = arith.constant 1 : i32
    %160 = arith.subi %159, %c1_i32_95 : i32
    %c0_i32_96 = arith.constant 0 : i32
    %161 = arith.select %155, %160, %c0_i32_96 : i32
    %162 = arith.index_cast %161 : i32 to index
    %c0_97 = arith.constant 0 : index
    %163 = vector.load %arg3[%162, %c0_97] : memref<4x128xf32, #tpu.memory_space<vmem>>, vector<1x128xf32>
    %164 = arith.select %155, %163, %158 : vector<1x128xf32>
    %c10 = arith.constant 10 : index
    %c0_98 = arith.constant 0 : index
    %165 = vector.load %arg4[%c10, %c0_98] : memref<32x128xf32, #tpu.memory_space<vmem>>, vector<1x128xf32>
    tpu.vector_store %arg4[%c10, %c0_98], %164 {strides = array<i32>} : memref<32x128xf32, #tpu.memory_space<vmem>>, vector<1x128xf32>,
    %c11_i32 = arith.constant 11 : i32
    %166 = arith.addi %0, %c11_i32 : i32
    %c0_i32_99 = arith.constant 0 : i32
    %167 = arith.addi %166, %c0_i32_99 : i32
    %168 = arith.index_cast %167 : i32 to index
    %169 = memref.load %arg1[%168] : memref<32xi32, #tpu.memory_space<smem>>
    %c0_i32_100 = arith.constant 0 : i32
    %170 = arith.cmpi slt, %169, %c0_i32_100 : i32
    %c0_i32_101 = arith.constant 0 : i32
    %171 = arith.maxsi %169, %c0_i32_101 : i32
    %172 = arith.index_cast %171 : i32 to index
    %c0_102 = arith.constant 0 : index
    %173 = vector.load %arg2[%172, %c0_102] : memref<32x128xf32, #tpu.memory_space<vmem>>, vector<1x128xf32>
    %c0_i32_103 = arith.constant 0 : i32
    %174 = arith.subi %c0_i32_103, %169 : i32
    %c1_i32_104 = arith.constant 1 : i32
    %175 = arith.subi %174, %c1_i32_104 : i32
    %c0_i32_105 = arith.constant 0 : i32
    %176 = arith.select %170, %175, %c0_i32_105 : i32
    %177 = arith.index_cast %176 : i32 to index
    %c0_106 = arith.constant 0 : index
    %178 = vector.load %arg3[%177, %c0_106] : memref<4x128xf32, #tpu.memory_space<vmem>>, vector<1x128xf32>
    %179 = arith.select %170, %178, %173 : vector<1x128xf32>
    %c11 = arith.constant 11 : index
    %c0_107 = arith.constant 0 : index
    %180 = vector.load %arg4[%c11, %c0_107] : memref<32x128xf32, #tpu.memory_space<vmem>>, vector<1x128xf32>
    tpu.vector_store %arg4[%c11, %c0_107], %179 {strides = array<i32>} : memref<32x128xf32, #tpu.memory_space<vmem>>, vector<1x128xf32>,
    %c12_i32 = arith.constant 12 : i32
    %181 = arith.addi %0, %c12_i32 : i32
    %c0_i32_108 = arith.constant 0 : i32
    %182 = arith.addi %181, %c0_i32_108 : i32
    %183 = arith.index_cast %182 : i32 to index
    %184 = memref.load %arg1[%183] : memref<32xi32, #tpu.memory_space<smem>>
    %c0_i32_109 = arith.constant 0 : i32
    %185 = arith.cmpi slt, %184, %c0_i32_109 : i32
    %c0_i32_110 = arith.constant 0 : i32
    %186 = arith.maxsi %184, %c0_i32_110 : i32
    %187 = arith.index_cast %186 : i32 to index
    %c0_111 = arith.constant 0 : index
    %188 = vector.load %arg2[%187, %c0_111] : memref<32x128xf32, #tpu.memory_space<vmem>>, vector<1x128xf32>
    %c0_i32_112 = arith.constant 0 : i32
    %189 = arith.subi %c0_i32_112, %184 : i32
    %c1_i32_113 = arith.constant 1 : i32
    %190 = arith.subi %189, %c1_i32_113 : i32
    %c0_i32_114 = arith.constant 0 : i32
    %191 = arith.select %185, %190, %c0_i32_114 : i32
    %192 = arith.index_cast %191 : i32 to index
    %c0_115 = arith.constant 0 : index
    %193 = vector.load %arg3[%192, %c0_115] : memref<4x128xf32, #tpu.memory_space<vmem>>, vector<1x128xf32>
    %194 = arith.select %185, %193, %188 : vector<1x128xf32>
    %c12 = arith.constant 12 : index
    %c0_116 = arith.constant 0 : index
    %195 = vector.load %arg4[%c12, %c0_116] : memref<32x128xf32, #tpu.memory_space<vmem>>, vector<1x128xf32>
    tpu.vector_store %arg4[%c12, %c0_116], %194 {strides = array<i32>} : memref<32x128xf32, #tpu.memory_space<vmem>>, vector<1x128xf32>,
    %c13_i32 = arith.constant 13 : i32
    %196 = arith.addi %0, %c13_i32 : i32
    %c0_i32_117 = arith.constant 0 : i32
    %197 = arith.addi %196, %c0_i32_117 : i32
    %198 = arith.index_cast %197 : i32 to index
    %199 = memref.load %arg1[%198] : memref<32xi32, #tpu.memory_space<smem>>
    %c0_i32_118 = arith.constant 0 : i32
    %200 = arith.cmpi slt, %199, %c0_i32_118 : i32
    %c0_i32_119 = arith.constant 0 : i32
    %201 = arith.maxsi %199, %c0_i32_119 : i32
    %202 = arith.index_cast %201 : i32 to index
    %c0_120 = arith.constant 0 : index
    %203 = vector.load %arg2[%202, %c0_120] : memref<32x128xf32, #tpu.memory_space<vmem>>, vector<1x128xf32>
    %c0_i32_121 = arith.constant 0 : i32
    %204 = arith.subi %c0_i32_121, %199 : i32
    %c1_i32_122 = arith.constant 1 : i32
    %205 = arith.subi %204, %c1_i32_122 : i32
    %c0_i32_123 = arith.constant 0 : i32
    %206 = arith.select %200, %205, %c0_i32_123 : i32
    %207 = arith.index_cast %206 : i32 to index
    %c0_124 = arith.constant 0 : index
    %208 = vector.load %arg3[%207, %c0_124] : memref<4x128xf32, #tpu.memory_space<vmem>>, vector<1x128xf32>
    %209 = arith.select %200, %208, %203 : vector<1x128xf32>
    %c13 = arith.constant 13 : index
    %c0_125 = arith.constant 0 : index
    %210 = vector.load %arg4[%c13, %c0_125] : memref<32x128xf32, #tpu.memory_space<vmem>>, vector<1x128xf32>
    tpu.vector_store %arg4[%c13, %c0_125], %209 {strides = array<i32>} : memref<32x128xf32, #tpu.memory_space<vmem>>, vector<1x128xf32>,
    %c14_i32 = arith.constant 14 : i32
    %211 = arith.addi %0, %c14_i32 : i32
    %c0_i32_126 = arith.constant 0 : i32
    %212 = arith.addi %211, %c0_i32_126 : i32
    %213 = arith.index_cast %212 : i32 to index
    %214 = memref.load %arg1[%213] : memref<32xi32, #tpu.memory_space<smem>>
    %c0_i32_127 = arith.constant 0 : i32
    %215 = arith.cmpi slt, %214, %c0_i32_127 : i32
    %c0_i32_128 = arith.constant 0 : i32
    %216 = arith.maxsi %214, %c0_i32_128 : i32
    %217 = arith.index_cast %216 : i32 to index
    %c0_129 = arith.constant 0 : index
    %218 = vector.load %arg2[%217, %c0_129] : memref<32x128xf32, #tpu.memory_space<vmem>>, vector<1x128xf32>
    %c0_i32_130 = arith.constant 0 : i32
    %219 = arith.subi %c0_i32_130, %214 : i32
    %c1_i32_131 = arith.constant 1 : i32
    %220 = arith.subi %219, %c1_i32_131 : i32
    %c0_i32_132 = arith.constant 0 : i32
    %221 = arith.select %215, %220, %c0_i32_132 : i32
    %222 = arith.index_cast %221 : i32 to index
    %c0_133 = arith.constant 0 : index
    %223 = vector.load %arg3[%222, %c0_133] : memref<4x128xf32, #tpu.memory_space<vmem>>, vector<1x128xf32>
    %224 = arith.select %215, %223, %218 : vector<1x128xf32>
    %c14 = arith.constant 14 : index
    %c0_134 = arith.constant 0 : index
    %225 = vector.load %arg4[%c14, %c0_134] : memref<32x128xf32, #tpu.memory_space<vmem>>, vector<1x128xf32>
    tpu.vector_store %arg4[%c14, %c0_134], %224 {strides = array<i32>} : memref<32x128xf32, #tpu.memory_space<vmem>>, vector<1x128xf32>,
    %c15_i32 = arith.constant 15 : i32
    %226 = arith.addi %0, %c15_i32 : i32
    %c0_i32_135 = arith.constant 0 : i32
    %227 = arith.addi %226, %c0_i32_135 : i32
    %228 = arith.index_cast %227 : i32 to index
    %229 = memref.load %arg1[%228] : memref<32xi32, #tpu.memory_space<smem>>
    %c0_i32_136 = arith.constant 0 : i32
    %230 = arith.cmpi slt, %229, %c0_i32_136 : i32
    %c0_i32_137 = arith.constant 0 : i32
    %231 = arith.maxsi %229, %c0_i32_137 : i32
    %232 = arith.index_cast %231 : i32 to index
    %c0_138 = arith.constant 0 : index
    %233 = vector.load %arg2[%232, %c0_138] : memref<32x128xf32, #tpu.memory_space<vmem>>, vector<1x128xf32>
    %c0_i32_139 = arith.constant 0 : i32
    %234 = arith.subi %c0_i32_139, %229 : i32
    %c1_i32_140 = arith.constant 1 : i32
    %235 = arith.subi %234, %c1_i32_140 : i32
    %c0_i32_141 = arith.constant 0 : i32
    %236 = arith.select %230, %235, %c0_i32_141 : i32
    %237 = arith.index_cast %236 : i32 to index
    %c0_142 = arith.constant 0 : index
    %238 = vector.load %arg3[%237, %c0_142] : memref<4x128xf32, #tpu.memory_space<vmem>>, vector<1x128xf32>
    %239 = arith.select %230, %238, %233 : vector<1x128xf32>
    %c15 = arith.constant 15 : index
    %c0_143 = arith.constant 0 : index
    %240 = vector.load %arg4[%c15, %c0_143] : memref<32x128xf32, #tpu.memory_space<vmem>>, vector<1x128xf32>
    tpu.vector_store %arg4[%c15, %c0_143], %239 {strides = array<i32>} : memref<32x128xf32, #tpu.memory_space<vmem>>, vector<1x128xf32>,
    %c16_i32 = arith.constant 16 : i32
    %241 = arith.addi %0, %c16_i32 : i32
    %c0_i32_144 = arith.constant 0 : i32
    %242 = arith.addi %241, %c0_i32_144 : i32
    %243 = arith.index_cast %242 : i32 to index
    %244 = memref.load %arg1[%243] : memref<32xi32, #tpu.memory_space<smem>>
    %c0_i32_145 = arith.constant 0 : i32
    %245 = arith.cmpi slt, %244, %c0_i32_145 : i32
    %c0_i32_146 = arith.constant 0 : i32
    %246 = arith.maxsi %244, %c0_i32_146 : i32
    %247 = arith.index_cast %246 : i32 to index
    %c0_147 = arith.constant 0 : index
    %248 = vector.load %arg2[%247, %c0_147] : memref<32x128xf32, #tpu.memory_space<vmem>>, vector<1x128xf32>
    %c0_i32_148 = arith.constant 0 : i32
    %249 = arith.subi %c0_i32_148, %244 : i32
    %c1_i32_149 = arith.constant 1 : i32
    %250 = arith.subi %249, %c1_i32_149 : i32
    %c0_i32_150 = arith.constant 0 : i32
    %251 = arith.select %245, %250, %c0_i32_150 : i32
    %252 = arith.index_cast %251 : i32 to index
    %c0_151 = arith.constant 0 : index
    %253 = vector.load %arg3[%252, %c0_151] : memref<4x128xf32, #tpu.memory_space<vmem>>, vector<1x128xf32>
    %254 = arith.select %245, %253, %248 : vector<1x128xf32>
    %c16 = arith.constant 16 : index
    %c0_152 = arith.constant 0 : index
    %255 = vector.load %arg4[%c16, %c0_152] : memref<32x128xf32, #tpu.memory_space<vmem>>, vector<1x128xf32>
    tpu.vector_store %arg4[%c16, %c0_152], %254 {strides = array<i32>} : memref<32x128xf32, #tpu.memory_space<vmem>>, vector<1x128xf32>,
    %c17_i32 = arith.constant 17 : i32
    %256 = arith.addi %0, %c17_i32 : i32
    %c0_i32_153 = arith.constant 0 : i32
    %257 = arith.addi %256, %c0_i32_153 : i32
    %258 = arith.index_cast %257 : i32 to index
    %259 = memref.load %arg1[%258] : memref<32xi32, #tpu.memory_space<smem>>
    %c0_i32_154 = arith.constant 0 : i32
    %260 = arith.cmpi slt, %259, %c0_i32_154 : i32
    %c0_i32_155 = arith.constant 0 : i32
    %261 = arith.maxsi %259, %c0_i32_155 : i32
    %262 = arith.index_cast %261 : i32 to index
    %c0_156 = arith.constant 0 : index
    %263 = vector.load %arg2[%262, %c0_156] : memref<32x128xf32, #tpu.memory_space<vmem>>, vector<1x128xf32>
    %c0_i32_157 = arith.constant 0 : i32
    %264 = arith.subi %c0_i32_157, %259 : i32
    %c1_i32_158 = arith.constant 1 : i32
    %265 = arith.subi %264, %c1_i32_158 : i32
    %c0_i32_159 = arith.constant 0 : i32
    %266 = arith.select %260, %265, %c0_i32_159 : i32
    %267 = arith.index_cast %266 : i32 to index
    %c0_160 = arith.constant 0 : index
    %268 = vector.load %arg3[%267, %c0_160] : memref<4x128xf32, #tpu.memory_space<vmem>>, vector<1x128xf32>
    %269 = arith.select %260, %268, %263 : vector<1x128xf32>
    %c17 = arith.constant 17 : index
    %c0_161 = arith.constant 0 : index
    %270 = vector.load %arg4[%c17, %c0_161] : memref<32x128xf32, #tpu.memory_space<vmem>>, vector<1x128xf32>
    tpu.vector_store %arg4[%c17, %c0_161], %269 {strides = array<i32>} : memref<32x128xf32, #tpu.memory_space<vmem>>, vector<1x128xf32>,
    %c18_i32 = arith.constant 18 : i32
    %271 = arith.addi %0, %c18_i32 : i32
    %c0_i32_162 = arith.constant 0 : i32
    %272 = arith.addi %271, %c0_i32_162 : i32
    %273 = arith.index_cast %272 : i32 to index
    %274 = memref.load %arg1[%273] : memref<32xi32, #tpu.memory_space<smem>>
    %c0_i32_163 = arith.constant 0 : i32
    %275 = arith.cmpi slt, %274, %c0_i32_163 : i32
    %c0_i32_164 = arith.constant 0 : i32
    %276 = arith.maxsi %274, %c0_i32_164 : i32
    %277 = arith.index_cast %276 : i32 to index
    %c0_165 = arith.constant 0 : index
    %278 = vector.load %arg2[%277, %c0_165] : memref<32x128xf32, #tpu.memory_space<vmem>>, vector<1x128xf32>
    %c0_i32_166 = arith.constant 0 : i32
    %279 = arith.subi %c0_i32_166, %274 : i32
    %c1_i32_167 = arith.constant 1 : i32
    %280 = arith.subi %279, %c1_i32_167 : i32
    %c0_i32_168 = arith.constant 0 : i32
    %281 = arith.select %275, %280, %c0_i32_168 : i32
    %282 = arith.index_cast %281 : i32 to index
    %c0_169 = arith.constant 0 : index
    %283 = vector.load %arg3[%282, %c0_169] : memref<4x128xf32, #tpu.memory_space<vmem>>, vector<1x128xf32>
    %284 = arith.select %275, %283, %278 : vector<1x128xf32>
    %c18 = arith.constant 18 : index
    %c0_170 = arith.constant 0 : index
    %285 = vector.load %arg4[%c18, %c0_170] : memref<32x128xf32, #tpu.memory_space<vmem>>, vector<1x128xf32>
    tpu.vector_store %arg4[%c18, %c0_170], %284 {strides = array<i32>} : memref<32x128xf32, #tpu.memory_space<vmem>>, vector<1x128xf32>,
    %c19_i32 = arith.constant 19 : i32
    %286 = arith.addi %0, %c19_i32 : i32
    %c0_i32_171 = arith.constant 0 : i32
    %287 = arith.addi %286, %c0_i32_171 : i32
    %288 = arith.index_cast %287 : i32 to index
    %289 = memref.load %arg1[%288] : memref<32xi32, #tpu.memory_space<smem>>
    %c0_i32_172 = arith.constant 0 : i32
    %290 = arith.cmpi slt, %289, %c0_i32_172 : i32
    %c0_i32_173 = arith.constant 0 : i32
    %291 = arith.maxsi %289, %c0_i32_173 : i32
    %292 = arith.index_cast %291 : i32 to index
    %c0_174 = arith.constant 0 : index
    %293 = vector.load %arg2[%292, %c0_174] : memref<32x128xf32, #tpu.memory_space<vmem>>, vector<1x128xf32>
    %c0_i32_175 = arith.constant 0 : i32
    %294 = arith.subi %c0_i32_175, %289 : i32
    %c1_i32_176 = arith.constant 1 : i32
    %295 = arith.subi %294, %c1_i32_176 : i32
    %c0_i32_177 = arith.constant 0 : i32
    %296 = arith.select %290, %295, %c0_i32_177 : i32
    %297 = arith.index_cast %296 : i32 to index
    %c0_178 = arith.constant 0 : index
    %298 = vector.load %arg3[%297, %c0_178] : memref<4x128xf32, #tpu.memory_space<vmem>>, vector<1x128xf32>
    %299 = arith.select %290, %298, %293 : vector<1x128xf32>
    %c19 = arith.constant 19 : index
    %c0_179 = arith.constant 0 : index
    %300 = vector.load %arg4[%c19, %c0_179] : memref<32x128xf32, #tpu.memory_space<vmem>>, vector<1x128xf32>
    tpu.vector_store %arg4[%c19, %c0_179], %299 {strides = array<i32>} : memref<32x128xf32, #tpu.memory_space<vmem>>, vector<1x128xf32>,
    %c20_i32 = arith.constant 20 : i32
    %301 = arith.addi %0, %c20_i32 : i32
    %c0_i32_180 = arith.constant 0 : i32
    %302 = arith.addi %301, %c0_i32_180 : i32
    %303 = arith.index_cast %302 : i32 to index
    %304 = memref.load %arg1[%303] : memref<32xi32, #tpu.memory_space<smem>>
    %c0_i32_181 = arith.constant 0 : i32
    %305 = arith.cmpi slt, %304, %c0_i32_181 : i32
    %c0_i32_182 = arith.constant 0 : i32
    %306 = arith.maxsi %304, %c0_i32_182 : i32
    %307 = arith.index_cast %306 : i32 to index
    %c0_183 = arith.constant 0 : index
    %308 = vector.load %arg2[%307, %c0_183] : memref<32x128xf32, #tpu.memory_space<vmem>>, vector<1x128xf32>
    %c0_i32_184 = arith.constant 0 : i32
    %309 = arith.subi %c0_i32_184, %304 : i32
    %c1_i32_185 = arith.constant 1 : i32
    %310 = arith.subi %309, %c1_i32_185 : i32
    %c0_i32_186 = arith.constant 0 : i32
    %311 = arith.select %305, %310, %c0_i32_186 : i32
    %312 = arith.index_cast %311 : i32 to index
    %c0_187 = arith.constant 0 : index
    %313 = vector.load %arg3[%312, %c0_187] : memref<4x128xf32, #tpu.memory_space<vmem>>, vector<1x128xf32>
    %314 = arith.select %305, %313, %308 : vector<1x128xf32>
    %c20 = arith.constant 20 : index
    %c0_188 = arith.constant 0 : index
    %315 = vector.load %arg4[%c20, %c0_188] : memref<32x128xf32, #tpu.memory_space<vmem>>, vector<1x128xf32>
    tpu.vector_store %arg4[%c20, %c0_188], %314 {strides = array<i32>} : memref<32x128xf32, #tpu.memory_space<vmem>>, vector<1x128xf32>,
    %c21_i32 = arith.constant 21 : i32
    %316 = arith.addi %0, %c21_i32 : i32
    %c0_i32_189 = arith.constant 0 : i32
    %317 = arith.addi %316, %c0_i32_189 : i32
    %318 = arith.index_cast %317 : i32 to index
    %319 = memref.load %arg1[%318] : memref<32xi32, #tpu.memory_space<smem>>
    %c0_i32_190 = arith.constant 0 : i32
    %320 = arith.cmpi slt, %319, %c0_i32_190 : i32
    %c0_i32_191 = arith.constant 0 : i32
    %321 = arith.maxsi %319, %c0_i32_191 : i32
    %322 = arith.index_cast %321 : i32 to index
    %c0_192 = arith.constant 0 : index
    %323 = vector.load %arg2[%322, %c0_192] : memref<32x128xf32, #tpu.memory_space<vmem>>, vector<1x128xf32>
    %c0_i32_193 = arith.constant 0 : i32
    %324 = arith.subi %c0_i32_193, %319 : i32
    %c1_i32_194 = arith.constant 1 : i32
    %325 = arith.subi %324, %c1_i32_194 : i32
    %c0_i32_195 = arith.constant 0 : i32
    %326 = arith.select %320, %325, %c0_i32_195 : i32
    %327 = arith.index_cast %326 : i32 to index
    %c0_196 = arith.constant 0 : index
    %328 = vector.load %arg3[%327, %c0_196] : memref<4x128xf32, #tpu.memory_space<vmem>>, vector<1x128xf32>
    %329 = arith.select %320, %328, %323 : vector<1x128xf32>
    %c21 = arith.constant 21 : index
    %c0_197 = arith.constant 0 : index
    %330 = vector.load %arg4[%c21, %c0_197] : memref<32x128xf32, #tpu.memory_space<vmem>>, vector<1x128xf32>
    tpu.vector_store %arg4[%c21, %c0_197], %329 {strides = array<i32>} : memref<32x128xf32, #tpu.memory_space<vmem>>, vector<1x128xf32>,
    %c22_i32 = arith.constant 22 : i32
    %331 = arith.addi %0, %c22_i32 : i32
    %c0_i32_198 = arith.constant 0 : i32
    %332 = arith.addi %331, %c0_i32_198 : i32
    %333 = arith.index_cast %332 : i32 to index
    %334 = memref.load %arg1[%333] : memref<32xi32, #tpu.memory_space<smem>>
    %c0_i32_199 = arith.constant 0 : i32
    %335 = arith.cmpi slt, %334, %c0_i32_199 : i32
    %c0_i32_200 = arith.constant 0 : i32
    %336 = arith.maxsi %334, %c0_i32_200 : i32
    %337 = arith.index_cast %336 : i32 to index
    %c0_201 = arith.constant 0 : index
    %338 = vector.load %arg2[%337, %c0_201] : memref<32x128xf32, #tpu.memory_space<vmem>>, vector<1x128xf32>
    %c0_i32_202 = arith.constant 0 : i32
    %339 = arith.subi %c0_i32_202, %334 : i32
    %c1_i32_203 = arith.constant 1 : i32
    %340 = arith.subi %339, %c1_i32_203 : i32
    %c0_i32_204 = arith.constant 0 : i32
    %341 = arith.select %335, %340, %c0_i32_204 : i32
    %342 = arith.index_cast %341 : i32 to index
    %c0_205 = arith.constant 0 : index
    %343 = vector.load %arg3[%342, %c0_205] : memref<4x128xf32, #tpu.memory_space<vmem>>, vector<1x128xf32>
    %344 = arith.select %335, %343, %338 : vector<1x128xf32>
    %c22 = arith.constant 22 : index
    %c0_206 = arith.constant 0 : index
    %345 = vector.load %arg4[%c22, %c0_206] : memref<32x128xf32, #tpu.memory_space<vmem>>, vector<1x128xf32>
    tpu.vector_store %arg4[%c22, %c0_206], %344 {strides = array<i32>} : memref<32x128xf32, #tpu.memory_space<vmem>>, vector<1x128xf32>,
    %c23_i32 = arith.constant 23 : i32
    %346 = arith.addi %0, %c23_i32 : i32
    %c0_i32_207 = arith.constant 0 : i32
    %347 = arith.addi %346, %c0_i32_207 : i32
    %348 = arith.index_cast %347 : i32 to index
    %349 = memref.load %arg1[%348] : memref<32xi32, #tpu.memory_space<smem>>
    %c0_i32_208 = arith.constant 0 : i32
    %350 = arith.cmpi slt, %349, %c0_i32_208 : i32
    %c0_i32_209 = arith.constant 0 : i32
    %351 = arith.maxsi %349, %c0_i32_209 : i32
    %352 = arith.index_cast %351 : i32 to index
    %c0_210 = arith.constant 0 : index
    %353 = vector.load %arg2[%352, %c0_210] : memref<32x128xf32, #tpu.memory_space<vmem>>, vector<1x128xf32>
    %c0_i32_211 = arith.constant 0 : i32
    %354 = arith.subi %c0_i32_211, %349 : i32
    %c1_i32_212 = arith.constant 1 : i32
    %355 = arith.subi %354, %c1_i32_212 : i32
    %c0_i32_213 = arith.constant 0 : i32
    %356 = arith.select %350, %355, %c0_i32_213 : i32
    %357 = arith.index_cast %356 : i32 to index
    %c0_214 = arith.constant 0 : index
    %358 = vector.load %arg3[%357, %c0_214] : memref<4x128xf32, #tpu.memory_space<vmem>>, vector<1x128xf32>
    %359 = arith.select %350, %358, %353 : vector<1x128xf32>
    %c23 = arith.constant 23 : index
    %c0_215 = arith.constant 0 : index
    %360 = vector.load %arg4[%c23, %c0_215] : memref<32x128xf32, #tpu.memory_space<vmem>>, vector<1x128xf32>
    tpu.vector_store %arg4[%c23, %c0_215], %359 {strides = array<i32>} : memref<32x128xf32, #tpu.memory_space<vmem>>, vector<1x128xf32>,
    %c24_i32 = arith.constant 24 : i32
    %361 = arith.addi %0, %c24_i32 : i32
    %c0_i32_216 = arith.constant 0 : i32
    %362 = arith.addi %361, %c0_i32_216 : i32
    %363 = arith.index_cast %362 : i32 to index
    %364 = memref.load %arg1[%363] : memref<32xi32, #tpu.memory_space<smem>>
    %c0_i32_217 = arith.constant 0 : i32
    %365 = arith.cmpi slt, %364, %c0_i32_217 : i32
    %c0_i32_218 = arith.constant 0 : i32
    %366 = arith.maxsi %364, %c0_i32_218 : i32
    %367 = arith.index_cast %366 : i32 to index
    %c0_219 = arith.constant 0 : index
    %368 = vector.load %arg2[%367, %c0_219] : memref<32x128xf32, #tpu.memory_space<vmem>>, vector<1x128xf32>
    %c0_i32_220 = arith.constant 0 : i32
    %369 = arith.subi %c0_i32_220, %364 : i32
    %c1_i32_221 = arith.constant 1 : i32
    %370 = arith.subi %369, %c1_i32_221 : i32
    %c0_i32_222 = arith.constant 0 : i32
    %371 = arith.select %365, %370, %c0_i32_222 : i32
    %372 = arith.index_cast %371 : i32 to index
    %c0_223 = arith.constant 0 : index
    %373 = vector.load %arg3[%372, %c0_223] : memref<4x128xf32, #tpu.memory_space<vmem>>, vector<1x128xf32>
    %374 = arith.select %365, %373, %368 : vector<1x128xf32>
    %c24 = arith.constant 24 : index
    %c0_224 = arith.constant 0 : index
    %375 = vector.load %arg4[%c24, %c0_224] : memref<32x128xf32, #tpu.memory_space<vmem>>, vector<1x128xf32>
    tpu.vector_store %arg4[%c24, %c0_224], %374 {strides = array<i32>} : memref<32x128xf32, #tpu.memory_space<vmem>>, vector<1x128xf32>,
    %c25_i32 = arith.constant 25 : i32
    %376 = arith.addi %0, %c25_i32 : i32
    %c0_i32_225 = arith.constant 0 : i32
    %377 = arith.addi %376, %c0_i32_225 : i32
    %378 = arith.index_cast %377 : i32 to index
    %379 = memref.load %arg1[%378] : memref<32xi32, #tpu.memory_space<smem>>
    %c0_i32_226 = arith.constant 0 : i32
    %380 = arith.cmpi slt, %379, %c0_i32_226 : i32
    %c0_i32_227 = arith.constant 0 : i32
    %381 = arith.maxsi %379, %c0_i32_227 : i32
    %382 = arith.index_cast %381 : i32 to index
    %c0_228 = arith.constant 0 : index
    %383 = vector.load %arg2[%382, %c0_228] : memref<32x128xf32, #tpu.memory_space<vmem>>, vector<1x128xf32>
    %c0_i32_229 = arith.constant 0 : i32
    %384 = arith.subi %c0_i32_229, %379 : i32
    %c1_i32_230 = arith.constant 1 : i32
    %385 = arith.subi %384, %c1_i32_230 : i32
    %c0_i32_231 = arith.constant 0 : i32
    %386 = arith.select %380, %385, %c0_i32_231 : i32
    %387 = arith.index_cast %386 : i32 to index
    %c0_232 = arith.constant 0 : index
    %388 = vector.load %arg3[%387, %c0_232] : memref<4x128xf32, #tpu.memory_space<vmem>>, vector<1x128xf32>
    %389 = arith.select %380, %388, %383 : vector<1x128xf32>
    %c25 = arith.constant 25 : index
    %c0_233 = arith.constant 0 : index
    %390 = vector.load %arg4[%c25, %c0_233] : memref<32x128xf32, #tpu.memory_space<vmem>>, vector<1x128xf32>
    tpu.vector_store %arg4[%c25, %c0_233], %389 {strides = array<i32>} : memref<32x128xf32, #tpu.memory_space<vmem>>, vector<1x128xf32>,
    %c26_i32 = arith.constant 26 : i32
    %391 = arith.addi %0, %c26_i32 : i32
    %c0_i32_234 = arith.constant 0 : i32
    %392 = arith.addi %391, %c0_i32_234 : i32
    %393 = arith.index_cast %392 : i32 to index
    %394 = memref.load %arg1[%393] : memref<32xi32, #tpu.memory_space<smem>>
    %c0_i32_235 = arith.constant 0 : i32
    %395 = arith.cmpi slt, %394, %c0_i32_235 : i32
    %c0_i32_236 = arith.constant 0 : i32
    %396 = arith.maxsi %394, %c0_i32_236 : i32
    %397 = arith.index_cast %396 : i32 to index
    %c0_237 = arith.constant 0 : index
    %398 = vector.load %arg2[%397, %c0_237] : memref<32x128xf32, #tpu.memory_space<vmem>>, vector<1x128xf32>
    %c0_i32_238 = arith.constant 0 : i32
    %399 = arith.subi %c0_i32_238, %394 : i32
    %c1_i32_239 = arith.constant 1 : i32
    %400 = arith.subi %399, %c1_i32_239 : i32
    %c0_i32_240 = arith.constant 0 : i32
    %401 = arith.select %395, %400, %c0_i32_240 : i32
    %402 = arith.index_cast %401 : i32 to index
    %c0_241 = arith.constant 0 : index
    %403 = vector.load %arg3[%402, %c0_241] : memref<4x128xf32, #tpu.memory_space<vmem>>, vector<1x128xf32>
    %404 = arith.select %395, %403, %398 : vector<1x128xf32>
    %c26 = arith.constant 26 : index
    %c0_242 = arith.constant 0 : index
    %405 = vector.load %arg4[%c26, %c0_242] : memref<32x128xf32, #tpu.memory_space<vmem>>, vector<1x128xf32>
    tpu.vector_store %arg4[%c26, %c0_242], %404 {strides = array<i32>} : memref<32x128xf32, #tpu.memory_space<vmem>>, vector<1x128xf32>,
    %c27_i32 = arith.constant 27 : i32
    %406 = arith.addi %0, %c27_i32 : i32
    %c0_i32_243 = arith.constant 0 : i32
    %407 = arith.addi %406, %c0_i32_243 : i32
    %408 = arith.index_cast %407 : i32 to index
    %409 = memref.load %arg1[%408] : memref<32xi32, #tpu.memory_space<smem>>
    %c0_i32_244 = arith.constant 0 : i32
    %410 = arith.cmpi slt, %409, %c0_i32_244 : i32
    %c0_i32_245 = arith.constant 0 : i32
    %411 = arith.maxsi %409, %c0_i32_245 : i32
    %412 = arith.index_cast %411 : i32 to index
    %c0_246 = arith.constant 0 : index
    %413 = vector.load %arg2[%412, %c0_246] : memref<32x128xf32, #tpu.memory_space<vmem>>, vector<1x128xf32>
    %c0_i32_247 = arith.constant 0 : i32
    %414 = arith.subi %c0_i32_247, %409 : i32
    %c1_i32_248 = arith.constant 1 : i32
    %415 = arith.subi %414, %c1_i32_248 : i32
    %c0_i32_249 = arith.constant 0 : i32
    %416 = arith.select %410, %415, %c0_i32_249 : i32
    %417 = arith.index_cast %416 : i32 to index
    %c0_250 = arith.constant 0 : index
    %418 = vector.load %arg3[%417, %c0_250] : memref<4x128xf32, #tpu.memory_space<vmem>>, vector<1x128xf32>
    %419 = arith.select %410, %418, %413 : vector<1x128xf32>
    %c27 = arith.constant 27 : index
    %c0_251 = arith.constant 0 : index
    %420 = vector.load %arg4[%c27, %c0_251] : memref<32x128xf32, #tpu.memory_space<vmem>>, vector<1x128xf32>
    tpu.vector_store %arg4[%c27, %c0_251], %419 {strides = array<i32>} : memref<32x128xf32, #tpu.memory_space<vmem>>, vector<1x128xf32>,
    %c28_i32 = arith.constant 28 : i32
    %421 = arith.addi %0, %c28_i32 : i32
    %c0_i32_252 = arith.constant 0 : i32
    %422 = arith.addi %421, %c0_i32_252 : i32
    %423 = arith.index_cast %422 : i32 to index
    %424 = memref.load %arg1[%423] : memref<32xi32, #tpu.memory_space<smem>>
    %c0_i32_253 = arith.constant 0 : i32
    %425 = arith.cmpi slt, %424, %c0_i32_253 : i32
    %c0_i32_254 = arith.constant 0 : i32
    %426 = arith.maxsi %424, %c0_i32_254 : i32
    %427 = arith.index_cast %426 : i32 to index
    %c0_255 = arith.constant 0 : index
    %428 = vector.load %arg2[%427, %c0_255] : memref<32x128xf32, #tpu.memory_space<vmem>>, vector<1x128xf32>
    %c0_i32_256 = arith.constant 0 : i32
    %429 = arith.subi %c0_i32_256, %424 : i32
    %c1_i32_257 = arith.constant 1 : i32
    %430 = arith.subi %429, %c1_i32_257 : i32
    %c0_i32_258 = arith.constant 0 : i32
    %431 = arith.select %425, %430, %c0_i32_258 : i32
    %432 = arith.index_cast %431 : i32 to index
    %c0_259 = arith.constant 0 : index
    %433 = vector.load %arg3[%432, %c0_259] : memref<4x128xf32, #tpu.memory_space<vmem>>, vector<1x128xf32>
    %434 = arith.select %425, %433, %428 : vector<1x128xf32>
    %c28 = arith.constant 28 : index
    %c0_260 = arith.constant 0 : index
    %435 = vector.load %arg4[%c28, %c0_260] : memref<32x128xf32, #tpu.memory_space<vmem>>, vector<1x128xf32>
    tpu.vector_store %arg4[%c28, %c0_260], %434 {strides = array<i32>} : memref<32x128xf32, #tpu.memory_space<vmem>>, vector<1x128xf32>,
    %c29_i32 = arith.constant 29 : i32
    %436 = arith.addi %0, %c29_i32 : i32
    %c0_i32_261 = arith.constant 0 : i32
    %437 = arith.addi %436, %c0_i32_261 : i32
    %438 = arith.index_cast %437 : i32 to index
    %439 = memref.load %arg1[%438] : memref<32xi32, #tpu.memory_space<smem>>
    %c0_i32_262 = arith.constant 0 : i32
    %440 = arith.cmpi slt, %439, %c0_i32_262 : i32
    %c0_i32_263 = arith.constant 0 : i32
    %441 = arith.maxsi %439, %c0_i32_263 : i32
    %442 = arith.index_cast %441 : i32 to index
    %c0_264 = arith.constant 0 : index
    %443 = vector.load %arg2[%442, %c0_264] : memref<32x128xf32, #tpu.memory_space<vmem>>, vector<1x128xf32>
    %c0_i32_265 = arith.constant 0 : i32
    %444 = arith.subi %c0_i32_265, %439 : i32
    %c1_i32_266 = arith.constant 1 : i32
    %445 = arith.subi %444, %c1_i32_266 : i32
    %c0_i32_267 = arith.constant 0 : i32
    %446 = arith.select %440, %445, %c0_i32_267 : i32
    %447 = arith.index_cast %446 : i32 to index
    %c0_268 = arith.constant 0 : index
    %448 = vector.load %arg3[%447, %c0_268] : memref<4x128xf32, #tpu.memory_space<vmem>>, vector<1x128xf32>
    %449 = arith.select %440, %448, %443 : vector<1x128xf32>
    %c29 = arith.constant 29 : index
    %c0_269 = arith.constant 0 : index
    %450 = vector.load %arg4[%c29, %c0_269] : memref<32x128xf32, #tpu.memory_space<vmem>>, vector<1x128xf32>
    tpu.vector_store %arg4[%c29, %c0_269], %449 {strides = array<i32>} : memref<32x128xf32, #tpu.memory_space<vmem>>, vector<1x128xf32>,
    %c30_i32 = arith.constant 30 : i32
    %451 = arith.addi %0, %c30_i32 : i32
    %c0_i32_270 = arith.constant 0 : i32
    %452 = arith.addi %451, %c0_i32_270 : i32
    %453 = arith.index_cast %452 : i32 to index
    %454 = memref.load %arg1[%453] : memref<32xi32, #tpu.memory_space<smem>>
    %c0_i32_271 = arith.constant 0 : i32
    %455 = arith.cmpi slt, %454, %c0_i32_271 : i32
    %c0_i32_272 = arith.constant 0 : i32
    %456 = arith.maxsi %454, %c0_i32_272 : i32
    %457 = arith.index_cast %456 : i32 to index
    %c0_273 = arith.constant 0 : index
    %458 = vector.load %arg2[%457, %c0_273] : memref<32x128xf32, #tpu.memory_space<vmem>>, vector<1x128xf32>
    %c0_i32_274 = arith.constant 0 : i32
    %459 = arith.subi %c0_i32_274, %454 : i32
    %c1_i32_275 = arith.constant 1 : i32
    %460 = arith.subi %459, %c1_i32_275 : i32
    %c0_i32_276 = arith.constant 0 : i32
    %461 = arith.select %455, %460, %c0_i32_276 : i32
    %462 = arith.index_cast %461 : i32 to index
    %c0_277 = arith.constant 0 : index
    %463 = vector.load %arg3[%462, %c0_277] : memref<4x128xf32, #tpu.memory_space<vmem>>, vector<1x128xf32>
    %464 = arith.select %455, %463, %458 : vector<1x128xf32>
    %c30 = arith.constant 30 : index
    %c0_278 = arith.constant 0 : index
    %465 = vector.load %arg4[%c30, %c0_278] : memref<32x128xf32, #tpu.memory_space<vmem>>, vector<1x128xf32>
    tpu.vector_store %arg4[%c30, %c0_278], %464 {strides = array<i32>} : memref<32x128xf32, #tpu.memory_space<vmem>>, vector<1x128xf32>,
    %c31_i32 = arith.constant 31 : i32
    %466 = arith.addi %0, %c31_i32 : i32
    %c0_i32_279 = arith.constant 0 : i32
    %467 = arith.addi %466, %c0_i32_279 : i32
    %468 = arith.index_cast %467 : i32 to index
    %469 = memref.load %arg1[%468] : memref<32xi32, #tpu.memory_space<smem>>
    %c0_i32_280 = arith.constant 0 : i32
    %470 = arith.cmpi slt, %469, %c0_i32_280 : i32
    %c0_i32_281 = arith.constant 0 : i32
    %471 = arith.maxsi %469, %c0_i32_281 : i32
    %472 = arith.index_cast %471 : i32 to index
    %c0_282 = arith.constant 0 : index
    %473 = vector.load %arg2[%472, %c0_282] : memref<32x128xf32, #tpu.memory_space<vmem>>, vector<1x128xf32>
    %c0_i32_283 = arith.constant 0 : i32
    %474 = arith.subi %c0_i32_283, %469 : i32
    %c1_i32_284 = arith.constant 1 : i32
    %475 = arith.subi %474, %c1_i32_284 : i32
    %c0_i32_285 = arith.constant 0 : i32
    %476 = arith.select %470, %475, %c0_i32_285 : i32
    %477 = arith.index_cast %476 : i32 to index
    %c0_286 = arith.constant 0 : index
    %478 = vector.load %arg3[%477, %c0_286] : memref<4x128xf32, #tpu.memory_space<vmem>>, vector<1x128xf32>
    %479 = arith.select %470, %478, %473 : vector<1x128xf32>
    %c31 = arith.constant 31 : index
    %c0_287 = arith.constant 0 : index
    %480 = vector.load %arg4[%c31, %c0_287] : memref<32x128xf32, #tpu.memory_space<vmem>>, vector<1x128xf32>
    tpu.vector_store %arg4[%c31, %c0_287], %479 {strides = array<i32>} : memref<32x128xf32, #tpu.memory_space<vmem>>, vector<1x128xf32>,
    return
  }
  func.func @transform_0(%arg0: i32, %arg1: memref<32xi32, #tpu.memory_space<smem>>) -> (i32, i32) {
    %c0_i32 = arith.constant 0 : i32
    %c0_i32_0 = arith.constant 0 : i32
    %c0_i32_1 = arith.constant 0 : i32
    return %c0_i32, %c0_i32_0 : i32, i32
  }
  func.func @transform_1(%arg0: i32, %arg1: memref<32xi32, #tpu.memory_space<smem>>) -> (i32, i32) {
    %c0_i32 = arith.constant 0 : i32
    %c0_i32_0 = arith.constant 0 : i32
    %c0_i32_1 = arith.constant 0 : i32
    return %c0_i32, %c0_i32_0 : i32, i32
  }
  func.func @transform_2(%arg0: i32, %arg1: memref<32xi32, #tpu.memory_space<smem>>) -> (i32, i32) {
    %c0_i32 = arith.constant 0 : i32
    %c0_i32_0 = arith.constant 0 : i32
    return %arg0, %c0_i32 : i32, i32
  }
}

</mosaic_0001>

<llo_original>
// kernel: tpu_custom_call.1
$region0: #{tpu_custom_call.1}
  #allocation0 [shape = 'u32[]', space=smem, size = 0x4, offset = 0x4, fixed_abs, tag = 'smem constant byte address 0x4 - core index']
  #allocation1 [shape = 'u32[144,128]{1,0:T(1,128)}', space=vmem, size = 0x12000, scoped, tag = 'internal scratch']
  #allocation2 [shape = 's32[1]{0}', space=sflag, size = 0x4, scoped, tag = 'scoped memory for tpu_custom_call.1']
  #allocation3 [shape = 'u8[512]{0}', space=smem, size = 0x200, scoped, tag = 'prefetched SMEM operand 0']
  %s0 = inlined_call_operand.hbm [shape: s32[32], index: 0, kind: input, shape index: {}]
  %s1 = inlined_call_operand.hbm [shape: f32[32,128], index: 1, kind: input, shape index: {}]
  %s2 = inlined_call_operand.hbm [shape: f32[4,128], index: 2, kind: input, shape index: {}]
  %s3 = inlined_call_operand.hbm [shape: f32[32,128], index: 3, kind: output, shape index: {}]
  %s4 = sld [smem:[#allocation0]]
  $region26: #{tpu_custom_call.1} parent=0
    _
  %s6 = ssub.s32 1, %s4
  %s7 = scalar_select 0, %s6, %s4
  %9 = dma.hbm_to_smem %s0, 16, [#allocation3], [#allocation2]
  %10 = dma.done [#allocation2], 16
  %11 = sfence
  $region1: #{tpu_custom_call.1} parent=0
    #allocation4 [shape = 'u8[16384]{0}', space=vmem, size = 0x4000, scoped, tag = 'input window, operand 1, single buffered']
    #allocation5 [shape = 's32[1]{0}', space=sflag, size = 0x4, scoped, tag = 'scoped memory for tpu_custom_call.1']
    #allocation6 [shape = 's32[1]{0}', space=sflag, size = 0x4, scoped, tag = 'scoped memory for tpu_custom_call.1']
    #allocation7 [shape = 'u8[2048]{0}', space=vmem, size = 0x800, scoped, tag = 'input window, operand 2, single buffered']
    #allocation8 [shape = 's32[1]{0}', space=sflag, size = 0x4, scoped, tag = 'scoped memory for tpu_custom_call.1']
    #allocation9 [shape = 'u8[16384]{0}', space=vmem, size = 0x4000, scoped, tag = 'output window, operand 0, single buffered']
    %12 = vsyncpa [#allocation5], 0
    %13 = vsyncpa [#allocation8], 0
    %14 = vsyncpa [#allocation6], 0
    // Predicated region
    $region2: #{tpu_custom_call.1} parent=1 // pred_check
      _
    $region3: #{tpu_custom_call.1} parent=1 // pred_check_branch
      %16 = sbr.rel (0) target = $region5
    $region4: #{tpu_custom_call.1} parent=1 // pred_region
      %s18 = ssub.s32 512, 512
      %19 = vsyncadd [#allocation5], %s18
      %s20 = sshll.u32 [#allocation4], 4
      %s21 = int_to_ptr.vmem [resolvable:$true] %s20
      %26 = dma.hbm_to_vmem [thread:$0]  %s1, 512, %s21, [#allocation5], 128, 128, 8
    $region5: #{tpu_custom_call.1} parent=1 // pred_fallthru
      _
    // Predicated region
    $region6: #{tpu_custom_call.1} parent=1 // pred_check
      _
    $region7: #{tpu_custom_call.1} parent=1 // pred_check_branch
      %28 = sbr.rel (0) target = $region9
    $region8: #{tpu_custom_call.1} parent=1 // pred_region
      %s30 = ssub.s32 64, 64
      %31 = vsyncadd [#allocation8], %s30
      %s33 = sshll.u32 [#allocation7], 4
      %s34 = int_to_ptr.vmem [resolvable:$true] %s33
      %36 = dma.hbm_to_vmem [thread:$0]  %s2, 64, %s34, [#allocation8]
    $region9: #{tpu_custom_call.1} parent=1 // pred_fallthru
      _
    // Predicated region
    $region10: #{tpu_custom_call.1} parent=1 // pred_check
      _
    $region11: #{tpu_custom_call.1} parent=1 // pred_check_branch
      %38 = sbr.rel (0) target = $region13
    $region12: #{tpu_custom_call.1} parent=1 // pred_region
      %39 = dma.done [#allocation5], 512
    $region13: #{tpu_custom_call.1} parent=1 // pred_fallthru
      _
    // Predicated region
    $region14: #{tpu_custom_call.1} parent=1 // pred_check
      _
    $region15: #{tpu_custom_call.1} parent=1 // pred_check_branch
      %41 = sbr.rel (0) target = $region17
    $region16: #{tpu_custom_call.1} parent=1 // pred_region
      %42 = dma.done [#allocation8], 64
    $region17: #{tpu_custom_call.1} parent=1 // pred_fallthru
      _
    %s43 = smul.u32 0, 32
    %s44 = sld [smem:[#allocation3 + %s43]]
    %p45 = scmp.lt.s32.totalorder %s44, 0
    %p46 = scmp.gt.s32.totalorder %s44, 0
    %s47 = scalar_select %p46, %s44, 0
    %s48 = scalar_lea.vmem [#allocation4], %s47
    %v49 = vld [vmem:[%s48] sm:$0x1]
    %s50 = ssub.s32 4294967295, %s44
    %s51 = scalar_select %p45, %s50, 0
    %s52 = scalar_lea.vmem [#allocation7], %s51
    %v53 = vld [vmem:[%s52] sm:$0x1]
    %s54 = scalar_select %p45, 1, 0
    %v55 = vstv %s54
    %vm56 = vcmp.eq.s32.totalorder %v55, 1
    %v57 = vsel %vm56, %v53, %v49
    %s58 = sadd.s32 %s43, 1
    %s59 = sld [smem:[#allocation3 + %s58]]
    %p60 = scmp.lt.s32.totalorder %s59, 0
    %p61 = scmp.gt.s32.totalorder %s59, 0
    %s62 = scalar_select %p61, %s59, 0
    %s63 = scalar_lea.vmem [#allocation4], %s62
    %v64 = vld [vmem:[%s63] sm:$0x1]
    %s65 = ssub.s32 4294967295, %s59
    %s66 = scalar_select %p60, %s65, 0
    %s67 = scalar_lea.vmem [#allocation7], %s66
    %v68 = vld [vmem:[%s67] sm:$0x1]
    %s69 = scalar_select %p60, 1, 0
    %v70 = vstv %s69
    %vm71 = vcmp.eq.s32.totalorder %v70, 1
    %v72 = vsel %vm71, %v68, %v64
    %s73 = sadd.s32 %s43, 2
    %s74 = sld [smem:[#allocation3 + %s73]]
    %p75 = scmp.lt.s32.totalorder %s74, 0
    %p76 = scmp.gt.s32.totalorder %s74, 0
    %s77 = scalar_select %p76, %s74, 0
    %s78 = scalar_lea.vmem [#allocation4], %s77
    %v79 = vld [vmem:[%s78] sm:$0x1]
    %s80 = ssub.s32 4294967295, %s74
    %s81 = scalar_select %p75, %s80, 0
    %s82 = scalar_lea.vmem [#allocation7], %s81
    %v83 = vld [vmem:[%s82] sm:$0x1]
    %s84 = scalar_select %p75, 1, 0
    %v85 = vstv %s84
    %vm86 = vcmp.eq.s32.totalorder %v85, 1
    %v87 = vsel %vm86, %v83, %v79
    %s88 = sadd.s32 %s43, 3
    %s89 = sld [smem:[#allocation3 + %s88]]
    %p90 = scmp.lt.s32.totalorder %s89, 0
    %p91 = scmp.gt.s32.totalorder %s89, 0
    %s92 = scalar_select %p91, %s89, 0
    %s93 = scalar_lea.vmem [#allocation4], %s92
    %v94 = vld [vmem:[%s93] sm:$0x1]
    %s95 = ssub.s32 4294967295, %s89
    %s96 = scalar_select %p90, %s95, 0
    %s97 = scalar_lea.vmem [#allocation7], %s96
    %v98 = vld [vmem:[%s97] sm:$0x1]
    %s99 = scalar_select %p90, 1, 0
    %v100 = vstv %s99
    %vm101 = vcmp.eq.s32.totalorder %v100, 1
    %v102 = vsel %vm101, %v98, %v94
    %s103 = sadd.s32 %s43, 4
    %s104 = sld [smem:[#allocation3 + %s103]]
    %p105 = scmp.lt.s32.totalorder %s104, 0
    %p106 = scmp.gt.s32.totalorder %s104, 0
    %s107 = scalar_select %p106, %s104, 0
    %s108 = scalar_lea.vmem [#allocation4], %s107
    %v109 = vld [vmem:[%s108] sm:$0x1]
    %s110 = ssub.s32 4294967295, %s104
    %s111 = scalar_select %p105, %s110, 0
    %s112 = scalar_lea.vmem [#allocation7], %s111
    %v113 = vld [vmem:[%s112] sm:$0x1]
    %s114 = scalar_select %p105, 1, 0
    %v115 = vstv %s114
    %vm116 = vcmp.eq.s32.totalorder %v115, 1
    %v117 = vsel %vm116, %v113, %v109
    %s118 = sadd.s32 %s43, 5
    %s119 = sld [smem:[#allocation3 + %s118]]
    %p120 = scmp.lt.s32.totalorder %s119, 0
    %p121 = scmp.gt.s32.totalorder %s119, 0
    %s122 = scalar_select %p121, %s119, 0
    %s123 = scalar_lea.vmem [#allocation4], %s122
    %v124 = vld [vmem:[%s123] sm:$0x1]
    %s125 = ssub.s32 4294967295, %s119
    %s126 = scalar_select %p120, %s125, 0
    %s127 = scalar_lea.vmem [#allocation7], %s126
    %v128 = vld [vmem:[%s127] sm:$0x1]
    %s129 = scalar_select %p120, 1, 0
    %v130 = vstv %s129
    %vm131 = vcmp.eq.s32.totalorder %v130, 1
    %v132 = vsel %vm131, %v128, %v124
    %s133 = sadd.s32 %s43, 6
    %s134 = sld [smem:[#allocation3 + %s133]]
    %p135 = scmp.lt.s32.totalorder %s134, 0
    %p136 = scmp.gt.s32.totalorder %s134, 0
    %s137 = scalar_select %p136, %s134, 0
    %s138 = scalar_lea.vmem [#allocation4], %s137
    %v139 = vld [vmem:[%s138] sm:$0x1]
    %s140 = ssub.s32 4294967295, %s134
    %s141 = scalar_select %p135, %s140, 0
    %s142 = scalar_lea.vmem [#allocation7], %s141
    %v143 = vld [vmem:[%s142] sm:$0x1]
    %s144 = scalar_select %p135, 1, 0
    %v145 = vstv %s144
    %vm146 = vcmp.eq.s32.totalorder %v145, 1
    %v147 = vsel %vm146, %v143, %v139
    %s148 = sadd.s32 %s43, 7
    %s149 = sld [smem:[#allocation3 + %s148]]
    %p150 = scmp.lt.s32.totalorder %s149, 0
    %p151 = scmp.gt.s32.totalorder %s149, 0
    %s152 = scalar_select %p151, %s149, 0
    %s153 = scalar_lea.vmem [#allocation4], %s152
    %v154 = vld [vmem:[%s153] sm:$0x1]
    %s155 = ssub.s32 4294967295, %s149
    %s156 = scalar_select %p150, %s155, 0
    %s157 = scalar_lea.vmem [#allocation7], %s156
    %v158 = vld [vmem:[%s157] sm:$0x1]
    %s159 = scalar_select %p150, 1, 0
    %v160 = vstv %s159
    %vm161 = vcmp.eq.s32.totalorder %v160, 1
    %v162 = vsel %vm161, %v158, %v154
    %v164 = vrot.slane %v72, 7
    %v167 = vrot.slane %v87, 6
    %v170 = vrot.slane %v102, 5
    %v173 = vrot.slane %v117, 4
    %v176 = vrot.slane %v132, 3
    %v179 = vrot.slane %v147, 2
    %v182 = vrot.slane %v162, 1
    %vm184 = vcmask 1040384
    %v185 = vsel %vm184, %v57, %v164
    %vm186 = vcmask 1041408
    %v187 = vsel %vm186, %v185, %v167
    %vm188 = vcmask 1042432
    %v189 = vsel %vm188, %v187, %v170
    %vm190 = vcmask 1043456
    %v191 = vsel %vm190, %v189, %v173
    %vm192 = vcmask 1044480
    %v193 = vsel %vm192, %v191, %v176
    %vm194 = vcmask 1045504
    %v195 = vsel %vm194, %v193, %v179
    %vm196 = vcmask 1046528
    %v197 = vsel %vm196, %v195, %v182
    %198 = vst [vmem:[#allocation9] sm:$0xff] %v197
    %s199 = sadd.s32 %s43, 8
    %s200 = sld [smem:[#allocation3 + %s199]]
    %p201 = scmp.lt.s32.totalorder %s200, 0
    %p202 = scmp.gt.s32.totalorder %s200, 0
    %s203 = scalar_select %p202, %s200, 0
    %s204 = scalar_lea.vmem [#allocation4], %s203
    %v205 = vld [vmem:[%s204] sm:$0x1]
    %s206 = ssub.s32 4294967295, %s200
    %s207 = scalar_select %p201, %s206, 0
    %s208 = scalar_lea.vmem [#allocation7], %s207
    %v209 = vld [vmem:[%s208] sm:$0x1]
    %s210 = scalar_select %p201, 1, 0
    %v211 = vstv %s210
    %vm212 = vcmp.eq.s32.totalorder %v211, 1
    %v213 = vsel %vm212, %v209, %v205
    %s214 = sadd.s32 %s43, 9
    %s215 = sld [smem:[#allocation3 + %s214]]
    %p216 = scmp.lt.s32.totalorder %s215, 0
    %p217 = scmp.gt.s32.totalorder %s215, 0
    %s218 = scalar_select %p217, %s215, 0
    %s219 = scalar_lea.vmem [#allocation4], %s218
    %v220 = vld [vmem:[%s219] sm:$0x1]
    %s221 = ssub.s32 4294967295, %s215
    %s222 = scalar_select %p216, %s221, 0
    %s223 = scalar_lea.vmem [#allocation7], %s222
    %v224 = vld [vmem:[%s223] sm:$0x1]
    %s225 = scalar_select %p216, 1, 0
    %v226 = vstv %s225
    %vm227 = vcmp.eq.s32.totalorder %v226, 1
    %v228 = vsel %vm227, %v224, %v220
    %s229 = sadd.s32 %s43, 10
    %s230 = sld [smem:[#allocation3 + %s229]]
    %p231 = scmp.lt.s32.totalorder %s230, 0
    %p232 = scmp.gt.s32.totalorder %s230, 0
    %s233 = scalar_select %p232, %s230, 0
    %s234 = scalar_lea.vmem [#allocation4], %s233
    %v235 = vld [vmem:[%s234] sm:$0x1]
    %s236 = ssub.s32 4294967295, %s230
    %s237 = scalar_select %p231, %s236, 0
    %s238 = scalar_lea.vmem [#allocation7], %s237
    %v239 = vld [vmem:[%s238] sm:$0x1]
    %s240 = scalar_select %p231, 1, 0
    %v241 = vstv %s240
    %vm242 = vcmp.eq.s32.totalorder %v241, 1
    %v243 = vsel %vm242, %v239, %v235
    %s244 = sadd.s32 %s43, 11
    %s245 = sld [smem:[#allocation3 + %s244]]
    %p246 = scmp.lt.s32.totalorder %s245, 0
    %p247 = scmp.gt.s32.totalorder %s245, 0
    %s248 = scalar_select %p247, %s245, 0
    %s249 = scalar_lea.vmem [#allocation4], %s248
    %v250 = vld [vmem:[%s249] sm:$0x1]
    %s251 = ssub.s32 4294967295, %s245
    %s252 = scalar_select %p246, %s251, 0
    %s253 = scalar_lea.vmem [#allocation7], %s252
    %v254 = vld [vmem:[%s253] sm:$0x1]
    %s255 = scalar_select %p246, 1, 0
    %v256 = vstv %s255
    %vm257 = vcmp.eq.s32.totalorder %v256, 1
    %v258 = vsel %vm257, %v254, %v250
    %s259 = sadd.s32 %s43, 12
    %s260 = sld [smem:[#allocation3 + %s259]]
    %p261 = scmp.lt.s32.totalorder %s260, 0
    %p262 = scmp.gt.s32.totalorder %s260, 0
    %s263 = scalar_select %p262, %s260, 0
    %s264 = scalar_lea.vmem [#allocation4], %s263
    %v265 = vld [vmem:[%s264] sm:$0x1]
    %s266 = ssub.s32 4294967295, %s260
    %s267 = scalar_select %p261, %s266, 0
    %s268 = scalar_lea.vmem [#allocation7], %s267
    %v269 = vld [vmem:[%s268] sm:$0x1]
    %s270 = scalar_select %p261, 1, 0
    %v271 = vstv %s270
    %vm272 = vcmp.eq.s32.totalorder %v271, 1
    %v273 = vsel %vm272, %v269, %v265
    %s274 = sadd.s32 %s43, 13
    %s275 = sld [smem:[#allocation3 + %s274]]
    %p276 = scmp.lt.s32.totalorder %s275, 0
    %p277 = scmp.gt.s32.totalorder %s275, 0
    %s278 = scalar_select %p277, %s275, 0
    %s279 = scalar_lea.vmem [#allocation4], %s278
    %v280 = vld [vmem:[%s279] sm:$0x1]
    %s281 = ssub.s32 4294967295, %s275
    %s282 = scalar_select %p276, %s281, 0
    %s283 = scalar_lea.vmem [#allocation7], %s282
    %v284 = vld [vmem:[%s283] sm:$0x1]
    %s285 = scalar_select %p276, 1, 0
    %v286 = vstv %s285
    %vm287 = vcmp.eq.s32.totalorder %v286, 1
    %v288 = vsel %vm287, %v284, %v280
    %s289 = sadd.s32 %s43, 14
    %s290 = sld [smem:[#allocation3 + %s289]]
    %p291 = scmp.lt.s32.totalorder %s290, 0
    %p292 = scmp.gt.s32.totalorder %s290, 0
    %s293 = scalar_select %p292, %s290, 0
    %s294 = scalar_lea.vmem [#allocation4], %s293
    %v295 = vld [vmem:[%s294] sm:$0x1]
    %s296 = ssub.s32 4294967295, %s290
    %s297 = scalar_select %p291, %s296, 0
    %s298 = scalar_lea.vmem [#allocation7], %s297
    %v299 = vld [vmem:[%s298] sm:$0x1]
    %s300 = scalar_select %p291, 1, 0
    %v301 = vstv %s300
    %vm302 = vcmp.eq.s32.totalorder %v301, 1
    %v303 = vsel %vm302, %v299, %v295
    %s304 = sadd.s32 %s43, 15
    %s305 = sld [smem:[#allocation3 + %s304]]
    %p306 = scmp.lt.s32.totalorder %s305, 0
    %p307 = scmp.gt.s32.totalorder %s305, 0
    %s308 = scalar_select %p307, %s305, 0
    %s309 = scalar_lea.vmem [#allocation4], %s308
    %v310 = vld [vmem:[%s309] sm:$0x1]
    %s311 = ssub.s32 4294967295, %s305
    %s312 = scalar_select %p306, %s311, 0
    %s313 = scalar_lea.vmem [#allocation7], %s312
    %v314 = vld [vmem:[%s313] sm:$0x1]
    %s315 = scalar_select %p306, 1, 0
    %v316 = vstv %s315
    %vm317 = vcmp.eq.s32.totalorder %v316, 1
    %v318 = vsel %vm317, %v314, %v310
    %v320 = vrot.slane %v228, 7
    %v323 = vrot.slane %v243, 6
    %v326 = vrot.slane %v258, 5
    %v329 = vrot.slane %v273, 4
    %v332 = vrot.slane %v288, 3
    %v335 = vrot.slane %v303, 2
    %v338 = vrot.slane %v318, 1
    %v340 = vsel %vm184, %v213, %v320
    %v341 = vsel %vm186, %v340, %v323
    %v342 = vsel %vm188, %v341, %v326
    %v343 = vsel %vm190, %v342, %v329
    %v344 = vsel %vm192, %v343, %v332
    %v345 = vsel %vm194, %v344, %v335
    %v346 = vsel %vm196, %v345, %v338
    %347 = vst [vmem:[#allocation9 + $0x8] sm:$0xff] %v346
    %s348 = sadd.s32 %s43, 16
    %s349 = sld [smem:[#allocation3 + %s348]]
    %p350 = scmp.lt.s32.totalorder %s349, 0
    %p351 = scmp.gt.s32.totalorder %s349, 0
    %s352 = scalar_select %p351, %s349, 0
    %s353 = scalar_lea.vmem [#allocation4], %s352
    %v354 = vld [vmem:[%s353] sm:$0x1]
    %s355 = ssub.s32 4294967295, %s349
    %s356 = scalar_select %p350, %s355, 0
    %s357 = scalar_lea.vmem [#allocation7], %s356
    %v358 = vld [vmem:[%s357] sm:$0x1]
    %s359 = scalar_select %p350, 1, 0
    %v360 = vstv %s359
    %vm361 = vcmp.eq.s32.totalorder %v360, 1
    %v362 = vsel %vm361, %v358, %v354
    %s363 = sadd.s32 %s43, 17
    %s364 = sld [smem:[#allocation3 + %s363]]
    %p365 = scmp.lt.s32.totalorder %s364, 0
    %p366 = scmp.gt.s32.totalorder %s364, 0
    %s367 = scalar_select %p366, %s364, 0
    %s368 = scalar_lea.vmem [#allocation4], %s367
    %v369 = vld [vmem:[%s368] sm:$0x1]
    %s370 = ssub.s32 4294967295, %s364
    %s371 = scalar_select %p365, %s370, 0
    %s372 = scalar_lea.vmem [#allocation7], %s371
    %v373 = vld [vmem:[%s372] sm:$0x1]
    %s374 = scalar_select %p365, 1, 0
    %v375 = vstv %s374
    %vm376 = vcmp.eq.s32.totalorder %v375, 1
    %v377 = vsel %vm376, %v373, %v369
    %s378 = sadd.s32 %s43, 18
    %s379 = sld [smem:[#allocation3 + %s378]]
    %p380 = scmp.lt.s32.totalorder %s379, 0
    %p381 = scmp.gt.s32.totalorder %s379, 0
    %s382 = scalar_select %p381, %s379, 0
    %s383 = scalar_lea.vmem [#allocation4], %s382
    %v384 = vld [vmem:[%s383] sm:$0x1]
    %s385 = ssub.s32 4294967295, %s379
    %s386 = scalar_select %p380, %s385, 0
    %s387 = scalar_lea.vmem [#allocation7], %s386
    %v388 = vld [vmem:[%s387] sm:$0x1]
    %s389 = scalar_select %p380, 1, 0
    %v390 = vstv %s389
    %vm391 = vcmp.eq.s32.totalorder %v390, 1
    %v392 = vsel %vm391, %v388, %v384
    %s393 = sadd.s32 %s43, 19
    %s394 = sld [smem:[#allocation3 + %s393]]
    %p395 = scmp.lt.s32.totalorder %s394, 0
    %p396 = scmp.gt.s32.totalorder %s394, 0
    %s397 = scalar_select %p396, %s394, 0
    %s398 = scalar_lea.vmem [#allocation4], %s397
    %v399 = vld [vmem:[%s398] sm:$0x1]
    %s400 = ssub.s32 4294967295, %s394
    %s401 = scalar_select %p395, %s400, 0
    %s402 = scalar_lea.vmem [#allocation7], %s401
    %v403 = vld [vmem:[%s402] sm:$0x1]
    %s404 = scalar_select %p395, 1, 0
    %v405 = vstv %s404
    %vm406 = vcmp.eq.s32.totalorder %v405, 1
    %v407 = vsel %vm406, %v403, %v399
    %s408 = sadd.s32 %s43, 20
    %s409 = sld [smem:[#allocation3 + %s408]]
    %p410 = scmp.lt.s32.totalorder %s409, 0
    %p411 = scmp.gt.s32.totalorder %s409, 0
    %s412 = scalar_select %p411, %s409, 0
    %s413 = scalar_lea.vmem [#allocation4], %s412
    %v414 = vld [vmem:[%s413] sm:$0x1]
    %s415 = ssub.s32 4294967295, %s409
    %s416 = scalar_select %p410, %s415, 0
    %s417 = scalar_lea.vmem [#allocation7], %s416
    %v418 = vld [vmem:[%s417] sm:$0x1]
    %s419 = scalar_select %p410, 1, 0
    %v420 = vstv %s419
    %vm421 = vcmp.eq.s32.totalorder %v420, 1
    %v422 = vsel %vm421, %v418, %v414
    %s423 = sadd.s32 %s43, 21
    %s424 = sld [smem:[#allocation3 + %s423]]
    %p425 = scmp.lt.s32.totalorder %s424, 0
    %p426 = scmp.gt.s32.totalorder %s424, 0
    %s427 = scalar_select %p426, %s424, 0
    %s428 = scalar_lea.vmem [#allocation4], %s427
    %v429 = vld [vmem:[%s428] sm:$0x1]
    %s430 = ssub.s32 4294967295, %s424
    %s431 = scalar_select %p425, %s430, 0
    %s432 = scalar_lea.vmem [#allocation7], %s431
    %v433 = vld [vmem:[%s432] sm:$0x1]
    %s434 = scalar_select %p425, 1, 0
    %v435 = vstv %s434
    %vm436 = vcmp.eq.s32.totalorder %v435, 1
    %v437 = vsel %vm436, %v433, %v429
    %s438 = sadd.s32 %s43, 22
    %s439 = sld [smem:[#allocation3 + %s438]]
    %p440 = scmp.lt.s32.totalorder %s439, 0
    %p441 = scmp.gt.s32.totalorder %s439, 0
    %s442 = scalar_select %p441, %s439, 0
    %s443 = scalar_lea.vmem [#allocation4], %s442
    %v444 = vld [vmem:[%s443] sm:$0x1]
    %s445 = ssub.s32 4294967295, %s439
    %s446 = scalar_select %p440, %s445, 0
    %s447 = scalar_lea.vmem [#allocation7], %s446
    %v448 = vld [vmem:[%s447] sm:$0x1]
    %s449 = scalar_select %p440, 1, 0
    %v450 = vstv %s449
    %vm451 = vcmp.eq.s32.totalorder %v450, 1
    %v452 = vsel %vm451, %v448, %v444
    %s453 = sadd.s32 %s43, 23
    %s454 = sld [smem:[#allocation3 + %s453]]
    %p455 = scmp.lt.s32.totalorder %s454, 0
    %p456 = scmp.gt.s32.totalorder %s454, 0
    %s457 = scalar_select %p456, %s454, 0
    %s458 = scalar_lea.vmem [#allocation4], %s457
    %v459 = vld [vmem:[%s458] sm:$0x1]
    %s460 = ssub.s32 4294967295, %s454
    %s461 = scalar_select %p455, %s460, 0
    %s462 = scalar_lea.vmem [#allocation7], %s461
    %v463 = vld [vmem:[%s462] sm:$0x1]
    %s464 = scalar_select %p455, 1, 0
    %v465 = vstv %s464
    %vm466 = vcmp.eq.s32.totalorder %v465, 1
    %v467 = vsel %vm466, %v463, %v459
    %v469 = vrot.slane %v377, 7
    %v472 = vrot.slane %v392, 6
    %v475 = vrot.slane %v407, 5
    %v478 = vrot.slane %v422, 4
    %v481 = vrot.slane %v437, 3
    %v484 = vrot.slane %v452, 2
    %v487 = vrot.slane %v467, 1
    %v489 = vsel %vm184, %v362, %v469
    %v490 = vsel %vm186, %v489, %v472
    %v491 = vsel %vm188, %v490, %v475
    %v492 = vsel %vm190, %v491, %v478
    %v493 = vsel %vm192, %v492, %v481
    %v494 = vsel %vm194, %v493, %v484
    %v495 = vsel %vm196, %v494, %v487
    %496 = vst [vmem:[#allocation9 + $0x10] sm:$0xff] %v495
    %s497 = sadd.s32 %s43, 24
    %s498 = sld [smem:[#allocation3 + %s497]]
    %p499 = scmp.lt.s32.totalorder %s498, 0
    %p500 = scmp.gt.s32.totalorder %s498, 0
    %s501 = scalar_select %p500, %s498, 0
    %s502 = scalar_lea.vmem [#allocation4], %s501
    %v503 = vld [vmem:[%s502] sm:$0x1]
    %s504 = ssub.s32 4294967295, %s498
    %s505 = scalar_select %p499, %s504, 0
    %s506 = scalar_lea.vmem [#allocation7], %s505
    %v507 = vld [vmem:[%s506] sm:$0x1]
    %s508 = scalar_select %p499, 1, 0
    %v509 = vstv %s508
    %vm510 = vcmp.eq.s32.totalorder %v509, 1
    %v511 = vsel %vm510, %v507, %v503
    %s512 = sadd.s32 %s43, 25
    %s513 = sld [smem:[#allocation3 + %s512]]
    %p514 = scmp.lt.s32.totalorder %s513, 0
    %p515 = scmp.gt.s32.totalorder %s513, 0
    %s516 = scalar_select %p515, %s513, 0
    %s517 = scalar_lea.vmem [#allocation4], %s516
    %v518 = vld [vmem:[%s517] sm:$0x1]
    %s519 = ssub.s32 4294967295, %s513
    %s520 = scalar_select %p514, %s519, 0
    %s521 = scalar_lea.vmem [#allocation7], %s520
    %v522 = vld [vmem:[%s521] sm:$0x1]
    %s523 = scalar_select %p514, 1, 0
    %v524 = vstv %s523
    %vm525 = vcmp.eq.s32.totalorder %v524, 1
    %v526 = vsel %vm525, %v522, %v518
    %s527 = sadd.s32 %s43, 26
    %s528 = sld [smem:[#allocation3 + %s527]]
    %p529 = scmp.lt.s32.totalorder %s528, 0
    %p530 = scmp.gt.s32.totalorder %s528, 0
    %s531 = scalar_select %p530, %s528, 0
    %s532 = scalar_lea.vmem [#allocation4], %s531
    %v533 = vld [vmem:[%s532] sm:$0x1]
    %s534 = ssub.s32 4294967295, %s528
    %s535 = scalar_select %p529, %s534, 0
    %s536 = scalar_lea.vmem [#allocation7], %s535
    %v537 = vld [vmem:[%s536] sm:$0x1]
    %s538 = scalar_select %p529, 1, 0
    %v539 = vstv %s538
    %vm540 = vcmp.eq.s32.totalorder %v539, 1
    %v541 = vsel %vm540, %v537, %v533
    %s542 = sadd.s32 %s43, 27
    %s543 = sld [smem:[#allocation3 + %s542]]
    %p544 = scmp.lt.s32.totalorder %s543, 0
    %p545 = scmp.gt.s32.totalorder %s543, 0
    %s546 = scalar_select %p545, %s543, 0
    %s547 = scalar_lea.vmem [#allocation4], %s546
    %v548 = vld [vmem:[%s547] sm:$0x1]
    %s549 = ssub.s32 4294967295, %s543
    %s550 = scalar_select %p544, %s549, 0
    %s551 = scalar_lea.vmem [#allocation7], %s550
    %v552 = vld [vmem:[%s551] sm:$0x1]
    %s553 = scalar_select %p544, 1, 0
    %v554 = vstv %s553
    %vm555 = vcmp.eq.s32.totalorder %v554, 1
    %v556 = vsel %vm555, %v552, %v548
    %s557 = sadd.s32 %s43, 28
    %s558 = sld [smem:[#allocation3 + %s557]]
    %p559 = scmp.lt.s32.totalorder %s558, 0
    %p560 = scmp.gt.s32.totalorder %s558, 0
    %s561 = scalar_select %p560, %s558, 0
    %s562 = scalar_lea.vmem [#allocation4], %s561
    %v563 = vld [vmem:[%s562] sm:$0x1]
    %s564 = ssub.s32 4294967295, %s558
    %s565 = scalar_select %p559, %s564, 0
    %s566 = scalar_lea.vmem [#allocation7], %s565
    %v567 = vld [vmem:[%s566] sm:$0x1]
    %s568 = scalar_select %p559, 1, 0
    %v569 = vstv %s568
    %vm570 = vcmp.eq.s32.totalorder %v569, 1
    %v571 = vsel %vm570, %v567, %v563
    %s572 = sadd.s32 %s43, 29
    %s573 = sld [smem:[#allocation3 + %s572]]
    %p574 = scmp.lt.s32.totalorder %s573, 0
    %p575 = scmp.gt.s32.totalorder %s573, 0
    %s576 = scalar_select %p575, %s573, 0
    %s577 = scalar_lea.vmem [#allocation4], %s576
    %v578 = vld [vmem:[%s577] sm:$0x1]
    %s579 = ssub.s32 4294967295, %s573
    %s580 = scalar_select %p574, %s579, 0
    %s581 = scalar_lea.vmem [#allocation7], %s580
    %v582 = vld [vmem:[%s581] sm:$0x1]
    %s583 = scalar_select %p574, 1, 0
    %v584 = vstv %s583
    %vm585 = vcmp.eq.s32.totalorder %v584, 1
    %v586 = vsel %vm585, %v582, %v578
    %s587 = sadd.s32 %s43, 30
    %s588 = sld [smem:[#allocation3 + %s587]]
    %p589 = scmp.lt.s32.totalorder %s588, 0
    %p590 = scmp.gt.s32.totalorder %s588, 0
    %s591 = scalar_select %p590, %s588, 0
    %s592 = scalar_lea.vmem [#allocation4], %s591
    %v593 = vld [vmem:[%s592] sm:$0x1]
    %s594 = ssub.s32 4294967295, %s588
    %s595 = scalar_select %p589, %s594, 0
    %s596 = scalar_lea.vmem [#allocation7], %s595
    %v597 = vld [vmem:[%s596] sm:$0x1]
    %s598 = scalar_select %p589, 1, 0
    %v599 = vstv %s598
    %vm600 = vcmp.eq.s32.totalorder %v599, 1
    %v601 = vsel %vm600, %v597, %v593
    %s602 = sadd.s32 %s43, 31
    %s603 = sld [smem:[#allocation3 + %s602]]
    %p604 = scmp.lt.s32.totalorder %s603, 0
    %p605 = scmp.gt.s32.totalorder %s603, 0
    %s606 = scalar_select %p605, %s603, 0
    %s607 = scalar_lea.vmem [#allocation4], %s606
    %v608 = vld [vmem:[%s607] sm:$0x1]
    %s609 = ssub.s32 4294967295, %s603
    %s610 = scalar_select %p604, %s609, 0
    %s611 = scalar_lea.vmem [#allocation7], %s610
    %v612 = vld [vmem:[%s611] sm:$0x1]
    %s613 = scalar_select %p604, 1, 0
    %v614 = vstv %s613
    %vm615 = vcmp.eq.s32.totalorder %v614, 1
    %v616 = vsel %vm615, %v612, %v608
    %v618 = vrot.slane %v526, 7
    %v621 = vrot.slane %v541, 6
    %v624 = vrot.slane %v556, 5
    %v627 = vrot.slane %v571, 4
    %v630 = vrot.slane %v586, 3
    %v633 = vrot.slane %v601, 2
    %v636 = vrot.slane %v616, 1
    %v638 = vsel %vm184, %v511, %v618
    %v639 = vsel %vm186, %v638, %v621
    %v640 = vsel %vm188, %v639, %v624
    %v641 = vsel %vm190, %v640, %v627
    %v642 = vsel %vm192, %v641, %v630
    %v643 = vsel %vm194, %v642, %v633
    %v644 = vsel %vm196, %v643, %v636
    %645 = vst [vmem:[#allocation9 + $0x18] sm:$0xff] %v644
    // Predicated region
    $region18: #{tpu_custom_call.1} parent=1 // pred_check
      _
    $region19: #{tpu_custom_call.1} parent=1 // pred_check_branch
      %647 = sbr.rel (0) target = $region21
    $region20: #{tpu_custom_call.1} parent=1 // pred_region
      %s649 = ssub.s32 512, 512
      %650 = vsyncadd [#allocation6], %s649
      %s651 = sshll.u32 [#allocation9], 4
      %s652 = int_to_ptr.vmem [resolvable:$true] %s651
      %657 = dma.vmem_to_hbm [thread:$0]  %s652, 512, %s3, [#allocation6], 128, 128, 8
    $region21: #{tpu_custom_call.1} parent=1 // pred_fallthru
      _
    // Predicated region
    $region22: #{tpu_custom_call.1} parent=1 // pred_check
      _
    $region23: #{tpu_custom_call.1} parent=1 // pred_check_branch
      %659 = sbr.rel (0) target = $region25
    $region24: #{tpu_custom_call.1} parent=1 // pred_region
      %660 = dma.done [#allocation6], 512
    $region25: #{tpu_custom_call.1} parent=1 // pred_fallthru
      _
    %661 = vsyncpa [#allocation5], 1
    %662 = vsyncpa [#allocation8], 1
    %663 = vsyncpa [#allocation6], 1

// kernel: tpu_custom_call.1
$region0: #{tpu_custom_call.1}
  #allocation0 [shape = 'u32[]', space=smem, size = 0x4, offset = 0x4, fixed_abs, tag = 'smem constant byte address 0x4 - core index']
  #allocation1 [shape = 'u32[144,128]{1,0:T(1,128)}', space=vmem, size = 0x12000, scoped, tag = 'internal scratch']
  #allocation2 [shape = 's32[1]{0}', space=sflag, size = 0x4, scoped, tag = 'scoped memory for tpu_custom_call.1']
  #allocation3 [shape = 'u8[512]{0}', space=smem, size = 0x200, scoped, tag = 'prefetched SMEM operand 0']
  %s0 = inlined_call_operand.hbm [shape: s32[32], index: 0, kind: input, shape index: {}]
  %s1 = inlined_call_operand.hbm [shape: f32[32,128], index: 1, kind: input, shape index: {}]
  %s2 = inlined_call_operand.hbm [shape: f32[4,128], index: 2, kind: input, shape index: {}]
  %s3 = inlined_call_operand.hbm [shape: f32[32,128], index: 3, kind: output, shape index: {}]
  %s4 = sld [smem:[#allocation0]]
  $region26: #{tpu_custom_call.1} parent=0
    _
  %s6 = ssub.s32 1, %s4
  %s7 = scalar_select 0, %s6, %s4
  %9 = dma.hbm_to_smem %s0, 16, [#allocation3], [#allocation2]
  %10 = dma.done [#allocation2], 16
  %11 = sfence
  $region1: #{tpu_custom_call.1} parent=0
    #allocation4 [shape = 'u8[16384]{0}', space=vmem, size = 0x4000, scoped, tag = 'input window, operand 1, single buffered']
    #allocation5 [shape = 's32[1]{0}', space=sflag, size = 0x4, scoped, tag = 'scoped memory for tpu_custom_call.1']
    #allocation6 [shape = 's32[1]{0}', space=sflag, size = 0x4, scoped, tag = 'scoped memory for tpu_custom_call.1']
    #allocation7 [shape = 'u8[2048]{0}', space=vmem, size = 0x800, scoped, tag = 'input window, operand 2, single buffered']
    #allocation8 [shape = 's32[1]{0}', space=sflag, size = 0x4, scoped, tag = 'scoped memory for tpu_custom_call.1']
    #allocation9 [shape = 'u8[16384]{0}', space=vmem, size = 0x4000, scoped, tag = 'output window, operand 0, single buffered']
    %12 = vsyncpa [#allocation5], 0
    %13 = vsyncpa [#allocation8], 0
    %14 = vsyncpa [#allocation6], 0
    // Predicated region
    $region2: #{tpu_custom_call.1} parent=1 // pred_check
      _
    $region3: #{tpu_custom_call.1} parent=1 // pred_check_branch
      %16 = sbr.rel (0) target = $region5
    $region4: #{tpu_custom_call.1} parent=1 // pred_region
      %s18 = ssub.s32 512, 512
      %19 = vsyncadd [#allocation5], %s18
      %s20 = sshll.u32 [#allocation4], 4
      %s21 = int_to_ptr.vmem [resolvable:$true] %s20
      %26 = dma.hbm_to_vmem [thread:$0]  %s1, 512, %s21, [#allocation5], 128, 128, 8
    $region5: #{tpu_custom_call.1} parent=1 // pred_fallthru
      _
    // Predicated region
    $region6: #{tpu_custom_call.1} parent=1 // pred_check
      _
    $region7: #{tpu_custom_call.1} parent=1 // pred_check_branch
      %28 = sbr.rel (0) target = $region9
    $region8: #{tpu_custom_call.1} parent=1 // pred_region
      %s30 = ssub.s32 64, 64
      %31 = vsyncadd [#allocation8], %s30
      %s33 = sshll.u32 [#allocation7], 4
      %s34 = int_to_ptr.vmem [resolvable:$true] %s33
      %36 = dma.hbm_to_vmem [thread:$0]  %s2, 64, %s34, [#allocation8]
    $region9: #{tpu_custom_call.1} parent=1 // pred_fallthru
      _
    // Predicated region
    $region10: #{tpu_custom_call.1} parent=1 // pred_check
      _
    $region11: #{tpu_custom_call.1} parent=1 // pred_check_branch
      %38 = sbr.rel (0) target = $region13
    $region12: #{tpu_custom_call.1} parent=1 // pred_region
      %39 = dma.done [#allocation5], 512
    $region13: #{tpu_custom_call.1} parent=1 // pred_fallthru
      _
    // Predicated region
    $region14: #{tpu_custom_call.1} parent=1 // pred_check
      _
    $region15: #{tpu_custom_call.1} parent=1 // pred_check_branch
      %41 = sbr.rel (0) target = $region17
    $region16: #{tpu_custom_call.1} parent=1 // pred_region
      %42 = dma.done [#allocation8], 64
    $region17: #{tpu_custom_call.1} parent=1 // pred_fallthru
      _
    %s43 = smul.u32 0, 32
    %s44 = sld [smem:[#allocation3 + %s43]]
    %p45 = scmp.lt.s32.totalorder %s44, 0
    %p46 = scmp.gt.s32.totalorder %s44, 0
    %s47 = scalar_select %p46, %s44, 0
    %s48 = scalar_lea.vmem [#allocation4], %s47
    %v49 = vld [vmem:[%s48] sm:$0x1]
    %s50 = ssub.s32 4294967295, %s44
    %s51 = scalar_select %p45, %s50, 0
    %s52 = scalar_lea.vmem [#allocation7], %s51
    %v53 = vld [vmem:[%s52] sm:$0x1]
    %s54 = scalar_select %p45, 1, 0
    %v55 = vstv %s54
    %vm56 = vcmp.eq.s32.totalorder %v55, 1
    %v57 = vsel %vm56, %v53, %v49
    %58 = vst [vmem:[#allocation9] sm:$0x1] %v57
    %s59 = sadd.s32 %s43, 1
    %s60 = sld [smem:[#allocation3 + %s59]]
    %p61 = scmp.lt.s32.totalorder %s60, 0
    %p62 = scmp.gt.s32.totalorder %s60, 0
    %s63 = scalar_select %p62, %s60, 0
    %s64 = scalar_lea.vmem [#allocation4], %s63
    %v65 = vld [vmem:[%s64] sm:$0x1]
    %s66 = ssub.s32 4294967295, %s60
    %s67 = scalar_select %p61, %s66, 0
    %s68 = scalar_lea.vmem [#allocation7], %s67
    %v69 = vld [vmem:[%s68] sm:$0x1]
    %s70 = scalar_select %p61, 1, 0
    %v71 = vstv %s70
    %vm72 = vcmp.eq.s32.totalorder %v71, 1
    %v73 = vsel %vm72, %v69, %v65
    %74 = vst [vmem:[#allocation9 + $0x1] sm:$0x1] %v73
    %s75 = sadd.s32 %s43, 2
    %s76 = sld [smem:[#allocation3 + %s75]]
    %p77 = scmp.lt.s32.totalorder %s76, 0
    %p78 = scmp.gt.s32.totalorder %s76, 0
    %s79 = scalar_select %p78, %s76, 0
    %s80 = scalar_lea.vmem [#allocation4], %s79
    %v81 = vld [vmem:[%s80] sm:$0x1]
    %s82 = ssub.s32 4294967295, %s76
    %s83 = scalar_select %p77, %s82, 0
    %s84 = scalar_lea.vmem [#allocation7], %s83
    %v85 = vld [vmem:[%s84] sm:$0x1]
    %s86 = scalar_select %p77, 1, 0
    %v87 = vstv %s86
    %vm88 = vcmp.eq.s32.totalorder %v87, 1
    %v89 = vsel %vm88, %v85, %v81
    %90 = vst [vmem:[#allocation9 + $0x2] sm:$0x1] %v89
    %s91 = sadd.s32 %s43, 3
    %s92 = sld [smem:[#allocation3 + %s91]]
    %p93 = scmp.lt.s32.totalorder %s92, 0
    %p94 = scmp.gt.s32.totalorder %s92, 0
    %s95 = scalar_select %p94, %s92, 0
    %s96 = scalar_lea.vmem [#allocation4], %s95
    %v97 = vld [vmem:[%s96] sm:$0x1]
    %s98 = ssub.s32 4294967295, %s92
    %s99 = scalar_select %p93, %s98, 0
    %s100 = scalar_lea.vmem [#allocation7], %s99
    %v101 = vld [vmem:[%s100] sm:$0x1]
    %s102 = scalar_select %p93, 1, 0
    %v103 = vstv %s102
    %vm104 = vcmp.eq.s32.totalorder %v103, 1
    %v105 = vsel %vm104, %v101, %v97
    %106 = vst [vmem:[#allocation9 + $0x3] sm:$0x1] %v105
    %s107 = sadd.s32 %s43, 4
    %s108 = sld [smem:[#allocation3 + %s107]]
    %p109 = scmp.lt.s32.totalorder %s108, 0
    %p110 = scmp.gt.s32.totalorder %s108, 0
    %s111 = scalar_select %p110, %s108, 0
    %s112 = scalar_lea.vmem [#allocation4], %s111
    %v113 = vld [vmem:[%s112] sm:$0x1]
    %s114 = ssub.s32 4294967295, %s108
    %s115 = scalar_select %p109, %s114, 0
    %s116 = scalar_lea.vmem [#allocation7], %s115
    %v117 = vld [vmem:[%s116] sm:$0x1]
    %s118 = scalar_select %p109, 1, 0
    %v119 = vstv %s118
    %vm120 = vcmp.eq.s32.totalorder %v119, 1
    %v121 = vsel %vm120, %v117, %v113
    %122 = vst [vmem:[#allocation9 + $0x4] sm:$0x1] %v121
    %s123 = sadd.s32 %s43, 5
    %s124 = sld [smem:[#allocation3 + %s123]]
    %p125 = scmp.lt.s32.totalorder %s124, 0
    %p126 = scmp.gt.s32.totalorder %s124, 0
    %s127 = scalar_select %p126, %s124, 0
    %s128 = scalar_lea.vmem [#allocation4], %s127
    %v129 = vld [vmem:[%s128] sm:$0x1]
    %s130 = ssub.s32 4294967295, %s124
    %s131 = scalar_select %p125, %s130, 0
    %s132 = scalar_lea.vmem [#allocation7], %s131
    %v133 = vld [vmem:[%s132] sm:$0x1]
    %s134 = scalar_select %p125, 1, 0
    %v135 = vstv %s134
    %vm136 = vcmp.eq.s32.totalorder %v135, 1
    %v137 = vsel %vm136, %v133, %v129
    %138 = vst [vmem:[#allocation9 + $0x5] sm:$0x1] %v137
    %s139 = sadd.s32 %s43, 6
    %s140 = sld [smem:[#allocation3 + %s139]]
    %p141 = scmp.lt.s32.totalorder %s140, 0
    %p142 = scmp.gt.s32.totalorder %s140, 0
    %s143 = scalar_select %p142, %s140, 0
    %s144 = scalar_lea.vmem [#allocation4], %s143
    %v145 = vld [vmem:[%s144] sm:$0x1]
    %s146 = ssub.s32 4294967295, %s140
    %s147 = scalar_select %p141, %s146, 0
    %s148 = scalar_lea.vmem [#allocation7], %s147
    %v149 = vld [vmem:[%s148] sm:$0x1]
    %s150 = scalar_select %p141, 1, 0
    %v151 = vstv %s150
    %vm152 = vcmp.eq.s32.totalorder %v151, 1
    %v153 = vsel %vm152, %v149, %v145
    %154 = vst [vmem:[#allocation9 + $0x6] sm:$0x1] %v153
    %s155 = sadd.s32 %s43, 7
    %s156 = sld [smem:[#allocation3 + %s155]]
    %p157 = scmp.lt.s32.totalorder %s156, 0
    %p158 = scmp.gt.s32.totalorder %s156, 0
    %s159 = scalar_select %p158, %s156, 0
    %s160 = scalar_lea.vmem [#allocation4], %s159
    %v161 = vld [vmem:[%s160] sm:$0x1]
    %s162 = ssub.s32 4294967295, %s156
    %s163 = scalar_select %p157, %s162, 0
    %s164 = scalar_lea.vmem [#allocation7], %s163
    %v165 = vld [vmem:[%s164] sm:$0x1]
    %s166 = scalar_select %p157, 1, 0
    %v167 = vstv %s166
    %vm168 = vcmp.eq.s32.totalorder %v167, 1
    %v169 = vsel %vm168, %v165, %v161
    %170 = vst [vmem:[#allocation9 + $0x7] sm:$0x1] %v169
    %s171 = sadd.s32 %s43, 8
    %s172 = sld [smem:[#allocation3 + %s171]]
    %p173 = scmp.lt.s32.totalorder %s172, 0
    %p174 = scmp.gt.s32.totalorder %s172, 0
    %s175 = scalar_select %p174, %s172, 0
    %s176 = scalar_lea.vmem [#allocation4], %s175
    %v177 = vld [vmem:[%s176] sm:$0x1]
    %s178 = ssub.s32 4294967295, %s172
    %s179 = scalar_select %p173, %s178, 0
    %s180 = scalar_lea.vmem [#allocation7], %s179
    %v181 = vld [vmem:[%s180] sm:$0x1]
    %s182 = scalar_select %p173, 1, 0
    %v183 = vstv %s182
    %vm184 = vcmp.eq.s32.totalorder %v183, 1
    %v185 = vsel %vm184, %v181, %v177
    %186 = vst [vmem:[#allocation9 + $0x8] sm:$0x1] %v185
    %s187 = sadd.s32 %s43, 9
    %s188 = sld [smem:[#allocation3 + %s187]]
    %p189 = scmp.lt.s32.totalorder %s188, 0
    %p190 = scmp.gt.s32.totalorder %s188, 0
    %s191 = scalar_select %p190, %s188, 0
    %s192 = scalar_lea.vmem [#allocation4], %s191
    %v193 = vld [vmem:[%s192] sm:$0x1]
    %s194 = ssub.s32 4294967295, %s188
    %s195 = scalar_select %p189, %s194, 0
    %s196 = scalar_lea.vmem [#allocation7], %s195
    %v197 = vld [vmem:[%s196] sm:$0x1]
    %s198 = scalar_select %p189, 1, 0
    %v199 = vstv %s198
    %vm200 = vcmp.eq.s32.totalorder %v199, 1
    %v201 = vsel %vm200, %v197, %v193
    %202 = vst [vmem:[#allocation9 + $0x9] sm:$0x1] %v201
    %s203 = sadd.s32 %s43, 10
    %s204 = sld [smem:[#allocation3 + %s203]]
    %p205 = scmp.lt.s32.totalorder %s204, 0
    %p206 = scmp.gt.s32.totalorder %s204, 0
    %s207 = scalar_select %p206, %s204, 0
    %s208 = scalar_lea.vmem [#allocation4], %s207
    %v209 = vld [vmem:[%s208] sm:$0x1]
    %s210 = ssub.s32 4294967295, %s204
    %s211 = scalar_select %p205, %s210, 0
    %s212 = scalar_lea.vmem [#allocation7], %s211
    %v213 = vld [vmem:[%s212] sm:$0x1]
    %s214 = scalar_select %p205, 1, 0
    %v215 = vstv %s214
    %vm216 = vcmp.eq.s32.totalorder %v215, 1
    %v217 = vsel %vm216, %v213, %v209
    %218 = vst [vmem:[#allocation9 + $0xa] sm:$0x1] %v217
    %s219 = sadd.s32 %s43, 11
    %s220 = sld [smem:[#allocation3 + %s219]]
    %p221 = scmp.lt.s32.totalorder %s220, 0
    %p222 = scmp.gt.s32.totalorder %s220, 0
    %s223 = scalar_select %p222, %s220, 0
    %s224 = scalar_lea.vmem [#allocation4], %s223
    %v225 = vld [vmem:[%s224] sm:$0x1]
    %s226 = ssub.s32 4294967295, %s220
    %s227 = scalar_select %p221, %s226, 0
    %s228 = scalar_lea.vmem [#allocation7], %s227
    %v229 = vld [vmem:[%s228] sm:$0x1]
    %s230 = scalar_select %p221, 1, 0
    %v231 = vstv %s230
    %vm232 = vcmp.eq.s32.totalorder %v231, 1
    %v233 = vsel %vm232, %v229, %v225
    %234 = vst [vmem:[#allocation9 + $0xb] sm:$0x1] %v233
    %s235 = sadd.s32 %s43, 12
    %s236 = sld [smem:[#allocation3 + %s235]]
    %p237 = scmp.lt.s32.totalorder %s236, 0
    %p238 = scmp.gt.s32.totalorder %s236, 0
    %s239 = scalar_select %p238, %s236, 0
    %s240 = scalar_lea.vmem [#allocation4], %s239
    %v241 = vld [vmem:[%s240] sm:$0x1]
    %s242 = ssub.s32 4294967295, %s236
    %s243 = scalar_select %p237, %s242, 0
    %s244 = scalar_lea.vmem [#allocation7], %s243
    %v245 = vld [vmem:[%s244] sm:$0x1]
    %s246 = scalar_select %p237, 1, 0
    %v247 = vstv %s246
    %vm248 = vcmp.eq.s32.totalorder %v247, 1
    %v249 = vsel %vm248, %v245, %v241
    %250 = vst [vmem:[#allocation9 + $0xc] sm:$0x1] %v249
    %s251 = sadd.s32 %s43, 13
    %s252 = sld [smem:[#allocation3 + %s251]]
    %p253 = scmp.lt.s32.totalorder %s252, 0
    %p254 = scmp.gt.s32.totalorder %s252, 0
    %s255 = scalar_select %p254, %s252, 0
    %s256 = scalar_lea.vmem [#allocation4], %s255
    %v257 = vld [vmem:[%s256] sm:$0x1]
    %s258 = ssub.s32 4294967295, %s252
    %s259 = scalar_select %p253, %s258, 0
    %s260 = scalar_lea.vmem [#allocation7], %s259
    %v261 = vld [vmem:[%s260] sm:$0x1]
    %s262 = scalar_select %p253, 1, 0
    %v263 = vstv %s262
    %vm264 = vcmp.eq.s32.totalorder %v263, 1
    %v265 = vsel %vm264, %v261, %v257
    %266 = vst [vmem:[#allocation9 + $0xd] sm:$0x1] %v265
    %s267 = sadd.s32 %s43, 14
    %s268 = sld [smem:[#allocation3 + %s267]]
    %p269 = scmp.lt.s32.totalorder %s268, 0
    %p270 = scmp.gt.s32.totalorder %s268, 0
    %s271 = scalar_select %p270, %s268, 0
    %s272 = scalar_lea.vmem [#allocation4], %s271
    %v273 = vld [vmem:[%s272] sm:$0x1]
    %s274 = ssub.s32 4294967295, %s268
    %s275 = scalar_select %p269, %s274, 0
    %s276 = scalar_lea.vmem [#allocation7], %s275
    %v277 = vld [vmem:[%s276] sm:$0x1]
    %s278 = scalar_select %p269, 1, 0
    %v279 = vstv %s278
    %vm280 = vcmp.eq.s32.totalorder %v279, 1
    %v281 = vsel %vm280, %v277, %v273
    %282 = vst [vmem:[#allocation9 + $0xe] sm:$0x1] %v281
    %s283 = sadd.s32 %s43, 15
    %s284 = sld [smem:[#allocation3 + %s283]]
    %p285 = scmp.lt.s32.totalorder %s284, 0
    %p286 = scmp.gt.s32.totalorder %s284, 0
    %s287 = scalar_select %p286, %s284, 0
    %s288 = scalar_lea.vmem [#allocation4], %s287
    %v289 = vld [vmem:[%s288] sm:$0x1]
    %s290 = ssub.s32 4294967295, %s284
    %s291 = scalar_select %p285, %s290, 0
    %s292 = scalar_lea.vmem [#allocation7], %s291
    %v293 = vld [vmem:[%s292] sm:$0x1]
    %s294 = scalar_select %p285, 1, 0
    %v295 = vstv %s294
    %vm296 = vcmp.eq.s32.totalorder %v295, 1
    %v297 = vsel %vm296, %v293, %v289
    %298 = vst [vmem:[#allocation9 + $0xf] sm:$0x1] %v297
    %s299 = sadd.s32 %s43, 16
    %s300 = sld [smem:[#allocation3 + %s299]]
    %p301 = scmp.lt.s32.totalorder %s300, 0
    %p302 = scmp.gt.s32.totalorder %s300, 0
    %s303 = scalar_select %p302, %s300, 0
    %s304 = scalar_lea.vmem [#allocation4], %s303
    %v305 = vld [vmem:[%s304] sm:$0x1]
    %s306 = ssub.s32 4294967295, %s300
    %s307 = scalar_select %p301, %s306, 0
    %s308 = scalar_lea.vmem [#allocation7], %s307
    %v309 = vld [vmem:[%s308] sm:$0x1]
    %s310 = scalar_select %p301, 1, 0
    %v311 = vstv %s310
    %vm312 = vcmp.eq.s32.totalorder %v311, 1
    %v313 = vsel %vm312, %v309, %v305
    %314 = vst [vmem:[#allocation9 + $0x10] sm:$0x1] %v313
    %s315 = sadd.s32 %s43, 17
    %s316 = sld [smem:[#allocation3 + %s315]]
    %p317 = scmp.lt.s32.totalorder %s316, 0
    %p318 = scmp.gt.s32.totalorder %s316, 0
    %s319 = scalar_select %p318, %s316, 0
    %s320 = scalar_lea.vmem [#allocation4], %s319
    %v321 = vld [vmem:[%s320] sm:$0x1]
    %s322 = ssub.s32 4294967295, %s316
    %s323 = scalar_select %p317, %s322, 0
    %s324 = scalar_lea.vmem [#allocation7], %s323
    %v325 = vld [vmem:[%s324] sm:$0x1]
    %s326 = scalar_select %p317, 1, 0
    %v327 = vstv %s326
    %vm328 = vcmp.eq.s32.totalorder %v327, 1
    %v329 = vsel %vm328, %v325, %v321
    %330 = vst [vmem:[#allocation9 + $0x11] sm:$0x1] %v329
    %s331 = sadd.s32 %s43, 18
    %s332 = sld [smem:[#allocation3 + %s331]]
    %p333 = scmp.lt.s32.totalorder %s332, 0
    %p334 = scmp.gt.s32.totalorder %s332, 0
    %s335 = scalar_select %p334, %s332, 0
    %s336 = scalar_lea.vmem [#allocation4], %s335
    %v337 = vld [vmem:[%s336] sm:$0x1]
    %s338 = ssub.s32 4294967295, %s332
    %s339 = scalar_select %p333, %s338, 0
    %s340 = scalar_lea.vmem [#allocation7], %s339
    %v341 = vld [vmem:[%s340] sm:$0x1]
    %s342 = scalar_select %p333, 1, 0
    %v343 = vstv %s342
    %vm344 = vcmp.eq.s32.totalorder %v343, 1
    %v345 = vsel %vm344, %v341, %v337
    %346 = vst [vmem:[#allocation9 + $0x12] sm:$0x1] %v345
    %s347 = sadd.s32 %s43, 19
    %s348 = sld [smem:[#allocation3 + %s347]]
    %p349 = scmp.lt.s32.totalorder %s348, 0
    %p350 = scmp.gt.s32.totalorder %s348, 0
    %s351 = scalar_select %p350, %s348, 0
    %s352 = scalar_lea.vmem [#allocation4], %s351
    %v353 = vld [vmem:[%s352] sm:$0x1]
    %s354 = ssub.s32 4294967295, %s348
    %s355 = scalar_select %p349, %s354, 0
    %s356 = scalar_lea.vmem [#allocation7], %s355
    %v357 = vld [vmem:[%s356] sm:$0x1]
    %s358 = scalar_select %p349, 1, 0
    %v359 = vstv %s358
    %vm360 = vcmp.eq.s32.totalorder %v359, 1
    %v361 = vsel %vm360, %v357, %v353
    %362 = vst [vmem:[#allocation9 + $0x13] sm:$0x1] %v361
    %s363 = sadd.s32 %s43, 20
    %s364 = sld [smem:[#allocation3 + %s363]]
    %p365 = scmp.lt.s32.totalorder %s364, 0
    %p366 = scmp.gt.s32.totalorder %s364, 0
    %s367 = scalar_select %p366, %s364, 0
    %s368 = scalar_lea.vmem [#allocation4], %s367
    %v369 = vld [vmem:[%s368] sm:$0x1]
    %s370 = ssub.s32 4294967295, %s364
    %s371 = scalar_select %p365, %s370, 0
    %s372 = scalar_lea.vmem [#allocation7], %s371
    %v373 = vld [vmem:[%s372] sm:$0x1]
    %s374 = scalar_select %p365, 1, 0
    %v375 = vstv %s374
    %vm376 = vcmp.eq.s32.totalorder %v375, 1
    %v377 = vsel %vm376, %v373, %v369
    %378 = vst [vmem:[#allocation9 + $0x14] sm:$0x1] %v377
    %s379 = sadd.s32 %s43, 21
    %s380 = sld [smem:[#allocation3 + %s379]]
    %p381 = scmp.lt.s32.totalorder %s380, 0
    %p382 = scmp.gt.s32.totalorder %s380, 0
    %s383 = scalar_select %p382, %s380, 0
    %s384 = scalar_lea.vmem [#allocation4], %s383
    %v385 = vld [vmem:[%s384] sm:$0x1]
    %s386 = ssub.s32 4294967295, %s380
    %s387 = scalar_select %p381, %s386, 0
    %s388 = scalar_lea.vmem [#allocation7], %s387
    %v389 = vld [vmem:[%s388] sm:$0x1]
    %s390 = scalar_select %p381, 1, 0
    %v391 = vstv %s390
    %vm392 = vcmp.eq.s32.totalorder %v391, 1
    %v393 = vsel %vm392, %v389, %v385
    %394 = vst [vmem:[#allocation9 + $0x15] sm:$0x1] %v393
    %s395 = sadd.s32 %s43, 22
    %s396 = sld [smem:[#allocation3 + %s395]]
    %p397 = scmp.lt.s32.totalorder %s396, 0
    %p398 = scmp.gt.s32.totalorder %s396, 0
    %s399 = scalar_select %p398, %s396, 0
    %s400 = scalar_lea.vmem [#allocation4], %s399
    %v401 = vld [vmem:[%s400] sm:$0x1]
    %s402 = ssub.s32 4294967295, %s396
    %s403 = scalar_select %p397, %s402, 0
    %s404 = scalar_lea.vmem [#allocation7], %s403
    %v405 = vld [vmem:[%s404] sm:$0x1]
    %s406 = scalar_select %p397, 1, 0
    %v407 = vstv %s406
    %vm408 = vcmp.eq.s32.totalorder %v407, 1
    %v409 = vsel %vm408, %v405, %v401
    %410 = vst [vmem:[#allocation9 + $0x16] sm:$0x1] %v409
    %s411 = sadd.s32 %s43, 23
    %s412 = sld [smem:[#allocation3 + %s411]]
    %p413 = scmp.lt.s32.totalorder %s412, 0
    %p414 = scmp.gt.s32.totalorder %s412, 0
    %s415 = scalar_select %p414, %s412, 0
    %s416 = scalar_lea.vmem [#allocation4], %s415
    %v417 = vld [vmem:[%s416] sm:$0x1]
    %s418 = ssub.s32 4294967295, %s412
    %s419 = scalar_select %p413, %s418, 0
    %s420 = scalar_lea.vmem [#allocation7], %s419
    %v421 = vld [vmem:[%s420] sm:$0x1]
    %s422 = scalar_select %p413, 1, 0
    %v423 = vstv %s422
    %vm424 = vcmp.eq.s32.totalorder %v423, 1
    %v425 = vsel %vm424, %v421, %v417
    %426 = vst [vmem:[#allocation9 + $0x17] sm:$0x1] %v425
    %s427 = sadd.s32 %s43, 24
    %s428 = sld [smem:[#allocation3 + %s427]]
    %p429 = scmp.lt.s32.totalorder %s428, 0
    %p430 = scmp.gt.s32.totalorder %s428, 0
    %s431 = scalar_select %p430, %s428, 0
    %s432 = scalar_lea.vmem [#allocation4], %s431
    %v433 = vld [vmem:[%s432] sm:$0x1]
    %s434 = ssub.s32 4294967295, %s428
    %s435 = scalar_select %p429, %s434, 0
    %s436 = scalar_lea.vmem [#allocation7], %s435
    %v437 = vld [vmem:[%s436] sm:$0x1]
    %s438 = scalar_select %p429, 1, 0
    %v439 = vstv %s438
    %vm440 = vcmp.eq.s32.totalorder %v439, 1
    %v441 = vsel %vm440, %v437, %v433
    %442 = vst [vmem:[#allocation9 + $0x18] sm:$0x1] %v441
    %s443 = sadd.s32 %s43, 25
    %s444 = sld [smem:[#allocation3 + %s443]]
    %p445 = scmp.lt.s32.totalorder %s444, 0
    %p446 = scmp.gt.s32.totalorder %s444, 0
    %s447 = scalar_select %p446, %s444, 0
    %s448 = scalar_lea.vmem [#allocation4], %s447
    %v449 = vld [vmem:[%s448] sm:$0x1]
    %s450 = ssub.s32 4294967295, %s444
    %s451 = scalar_select %p445, %s450, 0
    %s452 = scalar_lea.vmem [#allocation7], %s451
    %v453 = vld [vmem:[%s452] sm:$0x1]
    %s454 = scalar_select %p445, 1, 0
    %v455 = vstv %s454
    %vm456 = vcmp.eq.s32.totalorder %v455, 1
    %v457 = vsel %vm456, %v453, %v449
    %458 = vst [vmem:[#allocation9 + $0x19] sm:$0x1] %v457
    %s459 = sadd.s32 %s43, 26
    %s460 = sld [smem:[#allocation3 + %s459]]
    %p461 = scmp.lt.s32.totalorder %s460, 0
    %p462 = scmp.gt.s32.totalorder %s460, 0
    %s463 = scalar_select %p462, %s460, 0
    %s464 = scalar_lea.vmem [#allocation4], %s463
    %v465 = vld [vmem:[%s464] sm:$0x1]
    %s466 = ssub.s32 4294967295, %s460
    %s467 = scalar_select %p461, %s466, 0
    %s468 = scalar_lea.vmem [#allocation7], %s467
    %v469 = vld [vmem:[%s468] sm:$0x1]
    %s470 = scalar_select %p461, 1, 0
    %v471 = vstv %s470
    %vm472 = vcmp.eq.s32.totalorder %v471, 1
    %v473 = vsel %vm472, %v469, %v465
    %474 = vst [vmem:[#allocation9 + $0x1a] sm:$0x1] %v473
    %s475 = sadd.s32 %s43, 27
    %s476 = sld [smem:[#allocation3 + %s475]]
    %p477 = scmp.lt.s32.totalorder %s476, 0
    %p478 = scmp.gt.s32.totalorder %s476, 0
    %s479 = scalar_select %p478, %s476, 0
    %s480 = scalar_lea.vmem [#allocation4], %s479
    %v481 = vld [vmem:[%s480] sm:$0x1]
    %s482 = ssub.s32 4294967295, %s476
    %s483 = scalar_select %p477, %s482, 0
    %s484 = scalar_lea.vmem [#allocation7], %s483
    %v485 = vld [vmem:[%s484] sm:$0x1]
    %s486 = scalar_select %p477, 1, 0
    %v487 = vstv %s486
    %vm488 = vcmp.eq.s32.totalorder %v487, 1
    %v489 = vsel %vm488, %v485, %v481
    %490 = vst [vmem:[#allocation9 + $0x1b] sm:$0x1] %v489
    %s491 = sadd.s32 %s43, 28
    %s492 = sld [smem:[#allocation3 + %s491]]
    %p493 = scmp.lt.s32.totalorder %s492, 0
    %p494 = scmp.gt.s32.totalorder %s492, 0
    %s495 = scalar_select %p494, %s492, 0
    %s496 = scalar_lea.vmem [#allocation4], %s495
    %v497 = vld [vmem:[%s496] sm:$0x1]
    %s498 = ssub.s32 4294967295, %s492
    %s499 = scalar_select %p493, %s498, 0
    %s500 = scalar_lea.vmem [#allocation7], %s499
    %v501 = vld [vmem:[%s500] sm:$0x1]
    %s502 = scalar_select %p493, 1, 0
    %v503 = vstv %s502
    %vm504 = vcmp.eq.s32.totalorder %v503, 1
    %v505 = vsel %vm504, %v501, %v497
    %506 = vst [vmem:[#allocation9 + $0x1c] sm:$0x1] %v505
    %s507 = sadd.s32 %s43, 29
    %s508 = sld [smem:[#allocation3 + %s507]]
    %p509 = scmp.lt.s32.totalorder %s508, 0
    %p510 = scmp.gt.s32.totalorder %s508, 0
    %s511 = scalar_select %p510, %s508, 0
    %s512 = scalar_lea.vmem [#allocation4], %s511
    %v513 = vld [vmem:[%s512] sm:$0x1]
    %s514 = ssub.s32 4294967295, %s508
    %s515 = scalar_select %p509, %s514, 0
    %s516 = scalar_lea.vmem [#allocation7], %s515
    %v517 = vld [vmem:[%s516] sm:$0x1]
    %s518 = scalar_select %p509, 1, 0
    %v519 = vstv %s518
    %vm520 = vcmp.eq.s32.totalorder %v519, 1
    %v521 = vsel %vm520, %v517, %v513
    %522 = vst [vmem:[#allocation9 + $0x1d] sm:$0x1] %v521
    %s523 = sadd.s32 %s43, 30
    %s524 = sld [smem:[#allocation3 + %s523]]
    %p525 = scmp.lt.s32.totalorder %s524, 0
    %p526 = scmp.gt.s32.totalorder %s524, 0
    %s527 = scalar_select %p526, %s524, 0
    %s528 = scalar_lea.vmem [#allocation4], %s527
    %v529 = vld [vmem:[%s528] sm:$0x1]
    %s530 = ssub.s32 4294967295, %s524
    %s531 = scalar_select %p525, %s530, 0
    %s532 = scalar_lea.vmem [#allocation7], %s531
    %v533 = vld [vmem:[%s532] sm:$0x1]
    %s534 = scalar_select %p525, 1, 0
    %v535 = vstv %s534
    %vm536 = vcmp.eq.s32.totalorder %v535, 1
    %v537 = vsel %vm536, %v533, %v529
    %538 = vst [vmem:[#allocation9 + $0x1e] sm:$0x1] %v537
    %s539 = sadd.s32 %s43, 31
    %s540 = sld [smem:[#allocation3 + %s539]]
    %p541 = scmp.lt.s32.totalorder %s540, 0
    %p542 = scmp.gt.s32.totalorder %s540, 0
    %s543 = scalar_select %p542, %s540, 0
    %s544 = scalar_lea.vmem [#allocation4], %s543
    %v545 = vld [vmem:[%s544] sm:$0x1]
    %s546 = ssub.s32 4294967295, %s540
    %s547 = scalar_select %p541, %s546, 0
    %s548 = scalar_lea.vmem [#allocation7], %s547
    %v549 = vld [vmem:[%s548] sm:$0x1]
    %s550 = scalar_select %p541, 1, 0
    %v551 = vstv %s550
    %vm552 = vcmp.eq.s32.totalorder %v551, 1
    %v553 = vsel %vm552, %v549, %v545
    %554 = vst [vmem:[#allocation9 + $0x1f] sm:$0x1] %v553
    // Predicated region
    $region18: #{tpu_custom_call.1} parent=1 // pred_check
      _
    $region19: #{tpu_custom_call.1} parent=1 // pred_check_branch
      %556 = sbr.rel (0) target = $region21
    $region20: #{tpu_custom_call.1} parent=1 // pred_region
      %s558 = ssub.s32 512, 512
      %559 = vsyncadd [#allocation6], %s558
      %s560 = sshll.u32 [#allocation9], 4
      %s561 = int_to_ptr.vmem [resolvable:$true] %s560
      %566 = dma.vmem_to_hbm [thread:$0]  %s561, 512, %s3, [#allocation6], 128, 128, 8
    $region21: #{tpu_custom_call.1} parent=1 // pred_fallthru
      _
    // Predicated region
    $region22: #{tpu_custom_call.1} parent=1 // pred_check
      _
    $region23: #{tpu_custom_call.1} parent=1 // pred_check_branch
      %568 = sbr.rel (0) target = $region25
    $region24: #{tpu_custom_call.1} parent=1 // pred_region
      %569 = dma.done [#allocation6], 512
    $region25: #{tpu_custom_call.1} parent=1 // pred_fallthru
      _
    %570 = vsyncpa [#allocation5], 1
    %571 = vsyncpa [#allocation8], 1
    %572 = vsyncpa [#allocation6], 1

</llo_original>
